<compile_context>
chip_gen: v7x
topology: tpu7x:2x2x1
jax: 0.10.0
libtpu: 0.0.40
codegen_flags: <defaults>
</compile_context>

<pallas_src>
import functools

import jax
import jax.numpy as jnp
from jax.experimental import pallas as pl
from jax.experimental.pallas import tpu as pltpu


# ----------------------------------------------------------------------------
# Fused kernel: grid = (layer in {0,1}, row tile).  Layer 1 fills the h1 scratch,
# layer 2 accumulates row-sums; the head (mean + linear + softmax) runs on the
# final grid step.
# ----------------------------------------------------------------------------
def _regression_kernel(
    h_ref,      # [N, Din]          node features, f32, resident
    a_ref,      # [R*TM, N]         bf16 adjacency slab for this row tile (all R relations)
    w1_ref,     # [(R+1)*Din, H1]   stacked per-relation weights + W_self (layer 1)
    b1_ref,     # [1, H1]
    w2_ref,     # [(R+1)*H1, H2]    stacked per-relation weights + W_self (layer 2)
    b2_ref,     # [1, H2]
    wc_ref,     # [H2, C]
    bc_ref,     # [1, C]
    o_ref,      # [1, C]            softmax probabilities
    h1_ref,     # scratch [N, H1]   inter-layer activations (resident across the grid)
    hsum_ref,   # scratch [1, H2]   running sum of layer-2 rows (for dgl.mean_nodes)
    *,
    n_nodes,
    n_rel,      # R (self-loop handled explicitly; W_self is the last weight block)
    tm,
    n_tiles,
    d_in,
    d_h1,
    d_h2,
):
    layer = pl.program_id(0)
    t = pl.program_id(1)
    row0 = pl.multiple_of(t * tm, tm)

    # bf16 -> f32 upcast is exact for 0/1 adjacency entries.
    a = a_ref[...].astype(jnp.float32)                       # [R*TM, N]

    def rgcn_tile(src_ref, w_ref, b_ref, din):
        # One fat aggregation dot for all R relations of this row tile (K = N).
        ah = jnp.dot(a, src_ref[...], preferred_element_type=jnp.float32)   # [R*TM, din]
        # Per-relation projection (tiny K) + explicit self-loop term; statically
        # unrolled, sublane-aligned static slices.
        acc = jnp.dot(ah[0:tm, :], w_ref[0:din, :],
                      preferred_element_type=jnp.float32)
        for r in range(1, n_rel):
            acc = acc + jnp.dot(ah[r * tm:(r + 1) * tm, :],
                                w_ref[r * din:(r + 1) * din, :],
                                preferred_element_type=jnp.float32)
        acc = acc + jnp.dot(src_ref[pl.ds(row0, tm), :],                     # self-loop
                            w_ref[n_rel * din:(n_rel + 1) * din, :],
                            preferred_element_type=jnp.float32)
        return jnp.maximum(acc + b_ref[...], 0.0)            # bias + F.relu

    @pl.when(layer == 0)
    def _layer1():
        h1_ref[pl.ds(row0, tm), :] = rgcn_tile(h_ref, w1_ref, b1_ref, d_in)

    @pl.when(layer == 1)
    def _layer2():
        @pl.when(t == 0)
        def _():
            hsum_ref[...] = jnp.zeros_like(hsum_ref)

        h2 = rgcn_tile(h1_ref, w2_ref, b2_ref, d_h1)          # [TM, H2]
        hsum_ref[...] += jnp.sum(h2, axis=0, keepdims=True)

        # Epilogue on the last tile: dgl.mean_nodes + nn.Linear + F.softmax(dim=1).
        @pl.when(t == n_tiles - 1)
        def _head():
            hg = hsum_ref[...] * (1.0 / n_nodes)              # [1, H2]
            logits = jnp.dot(hg, wc_ref[...],
                             preferred_element_type=jnp.float32) + bc_ref[...]
            logits = logits - jnp.max(logits, axis=-1, keepdims=True)
            e = jnp.exp(logits)
            o_ref[...] = e * pl.reciprocal(jnp.sum(e, axis=-1, keepdims=True),
                                           approx=False)


# ----------------------------------------------------------------------------
# One-time packing (graph + weights are static across inference calls).
# ----------------------------------------------------------------------------
def _default_row_tile(n):
    for tm in (256, 128, 64, 32, 16):
        if n % tm == 0:
            return tm
    return n


def pack_regression(params, adj, *, tile_rows=None):
    """adj: [R, N, N] dense per-relation adjacency (adj[r, dst, src])."""
    adj = jnp.asarray(adj)
    R, N, _ = adj.shape
    tm = tile_rows if tile_rows is not None else _default_row_tile(N)
    if N % tm != 0:
        # TODO(synk): pad N to a multiple of tm (masking padded rows in the mean)
        # for ragged graphs; demo sizes divide evenly.
        raise ValueError(f"N={N} must be divisible by tile_rows={tm}")
    n_tiles = N // tm

    # Adjacency in bf16 (exact for 0/1), reordered so each row tile's R relation
    # blocks are contiguous:  a[t*R*tm + r*tm + i, j] = adj[r, t*tm + i, j].
    a_packed = (adj.astype(jnp.bfloat16)
                   .reshape(R, n_tiles, tm, N)
                   .transpose(1, 0, 2, 3)
                   .reshape(R * N, N))

    def stack_w(w_rel, w_self):
        w = jnp.concatenate([w_rel, w_self[None]], axis=0)                  # [R+1, Din, Dout]
        return w.reshape((R + 1) * w_rel.shape[1], w_rel.shape[2])          # [(R+1)*Din, Dout]

    return dict(
        a=a_packed,
        w1=stack_w(params["w1"], params["w1_self"]), b1=params["b1"],
        w2=stack_w(params["w2"], params["w2_self"]), b2=params["b2"],
        wc=params["wc"], bc=params["bc"],
        meta=dict(R=int(R), N=int(N), tm=int(tm), n_tiles=int(n_tiles)),
    )


# ----------------------------------------------------------------------------
# Per-call path: just the pallas_call.
# ----------------------------------------------------------------------------
def regression_forward(packed, h):
    meta = packed["meta"]
    R, N, tm, n_tiles = meta["R"], meta["N"], meta["tm"], meta["n_tiles"]
    d_in = packed["w1"].shape[0] // (R + 1)
    d_h1 = packed["w1"].shape[1]
    d_h2 = packed["w2"].shape[1]
    C = packed["wc"].shape[1]

    h = h.astype(jnp.float32)                 # mirrors `h = h.type(torch.float32)`
    assert h.shape == (N, d_in)

    kernel = functools.partial(
        _regression_kernel,
        n_nodes=N, n_rel=R, tm=tm, n_tiles=n_tiles, d_in=d_in, d_h1=d_h1, d_h2=d_h2,
    )

    return pl.pallas_call(
        kernel,
        out_shape=jax.ShapeDtypeStruct((1, C), jnp.float32),
        grid=(2, n_tiles),
        in_specs=[
            pl.BlockSpec((N, d_in), lambda l, t: (0, 0)),              # resident
            pl.BlockSpec((R * tm, N), lambda l, t: (t, 0)),            # streamed (bf16)
            pl.BlockSpec(((R + 1) * d_in, d_h1), lambda l, t: (0, 0)),
            pl.BlockSpec((1, d_h1), lambda l, t: (0, 0)),
            pl.BlockSpec(((R + 1) * d_h1, d_h2), lambda l, t: (0, 0)),
            pl.BlockSpec((1, d_h2), lambda l, t: (0, 0)),
            pl.BlockSpec((d_h2, C), lambda l, t: (0, 0)),
            pl.BlockSpec((1, C), lambda l, t: (0, 0)),
        ],
        out_specs=pl.BlockSpec((1, C), lambda l, t: (0, 0)),
        scratch_shapes=[
            pltpu.VMEM((N, d_h1), jnp.float32),    # h1 (inter-layer activations)
            pltpu.VMEM((1, d_h2), jnp.float32),    # running row-sum for mean_nodes
        ],
        compiler_params=pltpu.CompilerParams(
            dimension_semantics=("arbitrary", "arbitrary"),
            vmem_limit_bytes=64 * 1024 * 1024,
        ),
    )(h, packed["a"], packed["w1"], packed["b1"],
      packed["w2"], packed["b2"], packed["wc"], packed["bc"])


# ----------------------------------------------------------------------------
# Pure-JAX reference for verification.
# ----------------------------------------------------------------------------
def regression_forward_ref(params, h, adj):
    h = h.astype(jnp.float32)

    def layer(x, w_rel, w_self, b):
        msgs = jnp.einsum("rij,jd,rde->ie", adj.astype(jnp.float32), x, w_rel)
        return jax.nn.relu(msgs + x @ w_self + b)

    x = layer(h, params["w1"], params["w1_self"], params["b1"])
    x = layer(x, params["w2"], params["w2_self"], params["b2"])
    hg = jnp.mean(x, axis=0, keepdims=True)
    return jax.nn.softmax(hg @ params["wc"] + params["bc"], axis=1)


if __name__ == "__main__":
    # Small synthetic problem: N nodes, R relation types, 2 row tiles per layer.
    N, R = 128, 3
    in_dim, hidden_dim1, hidden_dim2, n_classes = 8, 16, 16, 4

    key = jax.random.PRNGKey(0)
    ks = jax.random.split(key, 10)

    def init(k, shape, scale=0.1):
        return scale * jax.random.normal(k, shape, dtype=jnp.float32)

    params = {
        "w1": init(ks[0], (R, in_dim, hidden_dim1)),
        "w1_self": init(ks[1], (in_dim, hidden_dim1)),
        "b1": init(ks[2], (1, hidden_dim1)),
        "w2": init(ks[3], (R, hidden_dim1, hidden_dim2)),
        "w2_self": init(ks[4], (hidden_dim1, hidden_dim2)),
        "b2": init(ks[5], (1, hidden_dim2)),
        "wc": init(ks[6], (hidden_dim2, n_classes)),
        "bc": init(ks[7], (1, n_classes)),
    }

    # Node features (start in bf16 to exercise the torch.float32 cast path).
    h = jax.random.normal(ks[8], (N, in_dim), dtype=jnp.bfloat16)

    # Random graph: dense per-relation adjacency A[r, dst, src].
    edge_logits = jax.random.uniform(ks[9], (R, N, N))
    adj = (edge_logits < 0.1).astype(jnp.float32)

    # One-time packing (static graph + weights), then the per-call kernel.
    packed = pack_regression(params, adj, tile_rows=64)   # -> grid (2 layers, 2 tiles)
    out = jax.block_until_ready(regression_forward(packed, h))

    ref = regression_forward_ref(params, h, adj)
    assert out.shape == (1, n_classes)
    assert jnp.allclose(out, ref, atol=1e-5, rtol=1e-5), (out, ref)
    assert jnp.allclose(jnp.sum(out, axis=1), 1.0, atol=1e-5)

    print("KERNEL_OK")
</pallas_src>

<mosaic_0001>
module attributes {stable_mosaic.version = 11 : i64} {
  func.func @_regression_kernel(%arg0: i32, %arg1: i32, %arg2: memref<128x8xf32, #tpu.memory_space<vmem>>, %arg3: memref<192x128xbf16, #tpu.memory_space<vmem>>, %arg4: memref<32x16xf32, #tpu.memory_space<vmem>>, %arg5: memref<1x16xf32, #tpu.memory_space<vmem>>, %arg6: memref<64x16xf32, #tpu.memory_space<vmem>>, %arg7: memref<1x16xf32, #tpu.memory_space<vmem>>, %arg8: memref<16x4xf32, #tpu.memory_space<vmem>>, %arg9: memref<1x4xf32, #tpu.memory_space<vmem>>, %arg10: memref<1x4xf32, #tpu.memory_space<vmem>>, %arg11: memref<128x16xf32, #tpu.memory_space<vmem>>, %arg12: memref<1x16xf32, #tpu.memory_space<vmem>>) attributes {dimension_semantics = [#tpu.dimension_semantics<arbitrary>, #tpu.dimension_semantics<arbitrary>], iteration_bounds = array<i64: 2, 2>, scalar_prefetch = 0 : i64, scratch_operands = 2 : i64, tpu.core_type = #tpu.core_type<tc>, window_params = [{pipeline_mode = #tpu.pipeline_mode<synchronous>, transform_indices = @transform_0, window_bounds = array<i64: 128, 8>}, {transform_indices = @transform_1, window_bounds = array<i64: 192, 128>}, {pipeline_mode = #tpu.pipeline_mode<synchronous>, transform_indices = @transform_2, window_bounds = array<i64: 32, 16>}, {pipeline_mode = #tpu.pipeline_mode<synchronous>, transform_indices = @transform_3, window_bounds = array<i64: 1, 16>}, {pipeline_mode = #tpu.pipeline_mode<synchronous>, transform_indices = @transform_4, window_bounds = array<i64: 64, 16>}, {pipeline_mode = #tpu.pipeline_mode<synchronous>, transform_indices = @transform_5, window_bounds = array<i64: 1, 16>}, {pipeline_mode = #tpu.pipeline_mode<synchronous>, transform_indices = @transform_6, window_bounds = array<i64: 16, 4>}, {pipeline_mode = #tpu.pipeline_mode<synchronous>, transform_indices = @transform_7, window_bounds = array<i64: 1, 4>}, {pipeline_mode = #tpu.pipeline_mode<synchronous>, transform_indices = @transform_8, window_bounds = array<i64: 1, 4>}]} {
    %c64_i32 = arith.constant 64 : i32
    %0 = arith.muli %arg1, %c64_i32 : i32
    %1 = tpu.assume_multiple %0, 64 : i32
    %c0 = arith.constant 0 : index
    %c0_0 = arith.constant 0 : index
    %2 = vector.load %arg3[%c0, %c0_0] : memref<192x128xbf16, #tpu.memory_space<vmem>>, vector<192x128xbf16>
    %3 = arith.extf %2 : vector<192x128xbf16> to vector<192x128xf32>
    %c0_i32 = arith.constant 0 : i32
    %4 = arith.cmpi eq, %arg0, %c0_i32 : i32
    %5 = arith.extui %4 : i1 to i32
    %c0_i32_1 = arith.constant 0 : i32
    %6 = arith.cmpi ne, %5, %c0_i32_1 : i32
    scf.if %6 {
      %c0_3 = arith.constant 0 : index
      %c0_4 = arith.constant 0 : index
      %10 = vector.load %arg2[%c0_3, %c0_4] : memref<128x8xf32, #tpu.memory_space<vmem>>, vector<128x8xf32>
      %cst = arith.constant dense<0.000000e+00> : vector<192x8xf32>
      %11 = tpu.matmul %3, %10, %cst {dimension_numbers = #tpu.dot_dimension_numbers<[1], [0], [0], [1], [0, 0, 1, 1], [], []>} : vector<192x128xf32>, vector<128x8xf32>, vector<192x8xf32> -> vector<192x8xf32>
      %12 = vector.extract_strided_slice %11 {offsets = [0, 0], sizes = [64, 8], strides = [1, 1]} : vector<192x8xf32> to vector<64x8xf32>
      %c0_5 = arith.constant 0 : index
      %c0_6 = arith.constant 0 : index
      %13 = vector.load %arg4[%c0_5, %c0_6] : memref<32x16xf32, #tpu.memory_space<vmem>>, vector<8x16xf32>
      %cst_7 = arith.constant dense<0.000000e+00> : vector<64x16xf32>
      %14 = tpu.matmul %12, %13, %cst_7 {dimension_numbers = #tpu.dot_dimension_numbers<[1], [0], [0], [1], [0, 0, 1, 1], [], []>} : vector<64x8xf32>, vector<8x16xf32>, vector<64x16xf32> -> vector<64x16xf32>
      %15 = vector.extract_strided_slice %11 {offsets = [64, 0], sizes = [64, 8], strides = [1, 1]} : vector<192x8xf32> to vector<64x8xf32>
      %c8 = arith.constant 8 : index
      %c0_8 = arith.constant 0 : index
      %16 = vector.load %arg4[%c8, %c0_8] : memref<32x16xf32, #tpu.memory_space<vmem>>, vector<8x16xf32>
      %cst_9 = arith.constant dense<0.000000e+00> : vector<64x16xf32>
      %17 = tpu.matmul %15, %16, %cst_9 {dimension_numbers = #tpu.dot_dimension_numbers<[1], [0], [0], [1], [0, 0, 1, 1], [], []>} : vector<64x8xf32>, vector<8x16xf32>, vector<64x16xf32> -> vector<64x16xf32>
      %18 = arith.addf %14, %17 : vector<64x16xf32>
      %19 = vector.extract_strided_slice %11 {offsets = [128, 0], sizes = [64, 8], strides = [1, 1]} : vector<192x8xf32> to vector<64x8xf32>
      %c16 = arith.constant 16 : index
      %c0_10 = arith.constant 0 : index
      %20 = vector.load %arg4[%c16, %c0_10] : memref<32x16xf32, #tpu.memory_space<vmem>>, vector<8x16xf32>
      %cst_11 = arith.constant dense<0.000000e+00> : vector<64x16xf32>
      %21 = tpu.matmul %19, %20, %cst_11 {dimension_numbers = #tpu.dot_dimension_numbers<[1], [0], [0], [1], [0, 0, 1, 1], [], []>} : vector<64x8xf32>, vector<8x16xf32>, vector<64x16xf32> -> vector<64x16xf32>
      %22 = arith.addf %18, %21 : vector<64x16xf32>
      %23 = arith.index_cast %1 : i32 to index
      %c0_12 = arith.constant 0 : index
      %24 = vector.load %arg2[%23, %c0_12] : memref<128x8xf32, #tpu.memory_space<vmem>>, vector<64x8xf32>
      %c24 = arith.constant 24 : index
      %c0_13 = arith.constant 0 : index
      %25 = vector.load %arg4[%c24, %c0_13] : memref<32x16xf32, #tpu.memory_space<vmem>>, vector<8x16xf32>
      %cst_14 = arith.constant dense<0.000000e+00> : vector<64x16xf32>
      %26 = tpu.matmul %24, %25, %cst_14 {dimension_numbers = #tpu.dot_dimension_numbers<[1], [0], [0], [1], [0, 0, 1, 1], [], []>} : vector<64x8xf32>, vector<8x16xf32>, vector<64x16xf32> -> vector<64x16xf32>
      %27 = arith.addf %22, %26 : vector<64x16xf32>
      %c0_15 = arith.constant 0 : index
      %c0_16 = arith.constant 0 : index
      %28 = vector.load %arg5[%c0_15, %c0_16] : memref<1x16xf32, #tpu.memory_space<vmem>>, vector<1x16xf32>
      %29 = vector.broadcast %28 : vector<1x16xf32> to vector<64x16xf32>
      %30 = arith.addf %27, %29 : vector<64x16xf32>
      %cst_17 = arith.constant 0.000000e+00 : f32
      %31 = vector.broadcast %cst_17 : f32 to vector<64x16xf32>
      %32 = arith.maximumf %30, %31 : vector<64x16xf32>
      %33 = arith.index_cast %1 : i32 to index
      %c0_18 = arith.constant 0 : index
      %34 = vector.load %arg11[%33, %c0_18] : memref<128x16xf32, #tpu.memory_space<vmem>>, vector<64x16xf32>
      tpu.vector_store %arg11[%33, %c0_18], %32 {strides = array<i32>} : memref<128x16xf32, #tpu.memory_space<vmem>>, vector<64x16xf32>,
    } else {
    }
    %c1_i32 = arith.constant 1 : i32
    %7 = arith.cmpi eq, %arg0, %c1_i32 : i32
    %8 = arith.extui %7 : i1 to i32
    %c0_i32_2 = arith.constant 0 : i32
    %9 = arith.cmpi ne, %8, %c0_i32_2 : i32
    scf.if %9 {
      %c0_i32_3 = arith.constant 0 : i32
      %10 = arith.cmpi eq, %arg1, %c0_i32_3 : i32
      %11 = arith.extui %10 : i1 to i32
      %c0_i32_4 = arith.constant 0 : i32
      %12 = arith.cmpi ne, %11, %c0_i32_4 : i32
      scf.if %12 {
        %cst_27 = arith.constant 0.000000e+00 : f32
        %44 = vector.broadcast %cst_27 : f32 to vector<1x16xf32>
        %c0_28 = arith.constant 0 : index
        %c0_29 = arith.constant 0 : index
        %45 = vector.load %arg12[%c0_28, %c0_29] : memref<1x16xf32, #tpu.memory_space<vmem>>, vector<1x16xf32>
        tpu.vector_store %arg12[%c0_28, %c0_29], %44 {strides = array<i32>} : memref<1x16xf32, #tpu.memory_space<vmem>>, vector<1x16xf32>,
      } else {
      }
      %c0_5 = arith.constant 0 : index
      %c0_6 = arith.constant 0 : index
      %13 = vector.load %arg11[%c0_5, %c0_6] : memref<128x16xf32, #tpu.memory_space<vmem>>, vector<128x16xf32>
      %cst = arith.constant dense<0.000000e+00> : vector<192x16xf32>
      %14 = tpu.matmul %3, %13, %cst {dimension_numbers = #tpu.dot_dimension_numbers<[1], [0], [0], [1], [0, 0, 1, 1], [], []>} : vector<192x128xf32>, vector<128x16xf32>, vector<192x16xf32> -> vector<192x16xf32>
      %15 = vector.extract_strided_slice %14 {offsets = [0, 0], sizes = [64, 16], strides = [1, 1]} : vector<192x16xf32> to vector<64x16xf32>
      %c0_7 = arith.constant 0 : index
      %c0_8 = arith.constant 0 : index
      %16 = vector.load %arg6[%c0_7, %c0_8] : memref<64x16xf32, #tpu.memory_space<vmem>>, vector<16x16xf32>
      %cst_9 = arith.constant dense<0.000000e+00> : vector<64x16xf32>
      %17 = tpu.matmul %15, %16, %cst_9 {dimension_numbers = #tpu.dot_dimension_numbers<[1], [0], [0], [1], [0, 0, 1, 1], [], []>} : vector<64x16xf32>, vector<16x16xf32>, vector<64x16xf32> -> vector<64x16xf32>
      %18 = vector.extract_strided_slice %14 {offsets = [64, 0], sizes = [64, 16], strides = [1, 1]} : vector<192x16xf32> to vector<64x16xf32>
      %c16 = arith.constant 16 : index
      %c0_10 = arith.constant 0 : index
      %19 = vector.load %arg6[%c16, %c0_10] : memref<64x16xf32, #tpu.memory_space<vmem>>, vector<16x16xf32>
      %cst_11 = arith.constant dense<0.000000e+00> : vector<64x16xf32>
      %20 = tpu.matmul %18, %19, %cst_11 {dimension_numbers = #tpu.dot_dimension_numbers<[1], [0], [0], [1], [0, 0, 1, 1], [], []>} : vector<64x16xf32>, vector<16x16xf32>, vector<64x16xf32> -> vector<64x16xf32>
      %21 = arith.addf %17, %20 : vector<64x16xf32>
      %22 = vector.extract_strided_slice %14 {offsets = [128, 0], sizes = [64, 16], strides = [1, 1]} : vector<192x16xf32> to vector<64x16xf32>
      %c32 = arith.constant 32 : index
      %c0_12 = arith.constant 0 : index
      %23 = vector.load %arg6[%c32, %c0_12] : memref<64x16xf32, #tpu.memory_space<vmem>>, vector<16x16xf32>
      %cst_13 = arith.constant dense<0.000000e+00> : vector<64x16xf32>
      %24 = tpu.matmul %22, %23, %cst_13 {dimension_numbers = #tpu.dot_dimension_numbers<[1], [0], [0], [1], [0, 0, 1, 1], [], []>} : vector<64x16xf32>, vector<16x16xf32>, vector<64x16xf32> -> vector<64x16xf32>
      %25 = arith.addf %21, %24 : vector<64x16xf32>
      %26 = arith.index_cast %1 : i32 to index
      %c0_14 = arith.constant 0 : index
      %27 = vector.load %arg11[%26, %c0_14] : memref<128x16xf32, #tpu.memory_space<vmem>>, vector<64x16xf32>
      %c48 = arith.constant 48 : index
      %c0_15 = arith.constant 0 : index
      %28 = vector.load %arg6[%c48, %c0_15] : memref<64x16xf32, #tpu.memory_space<vmem>>, vector<16x16xf32>
      %cst_16 = arith.constant dense<0.000000e+00> : vector<64x16xf32>
      %29 = tpu.matmul %27, %28, %cst_16 {dimension_numbers = #tpu.dot_dimension_numbers<[1], [0], [0], [1], [0, 0, 1, 1], [], []>} : vector<64x16xf32>, vector<16x16xf32>, vector<64x16xf32> -> vector<64x16xf32>
      %30 = arith.addf %25, %29 : vector<64x16xf32>
      %c0_17 = arith.constant 0 : index
      %c0_18 = arith.constant 0 : index
      %31 = vector.load %arg7[%c0_17, %c0_18] : memref<1x16xf32, #tpu.memory_space<vmem>>, vector<1x16xf32>
      %32 = vector.broadcast %31 : vector<1x16xf32> to vector<64x16xf32>
      %33 = arith.addf %30, %32 : vector<64x16xf32>
      %cst_19 = arith.constant 0.000000e+00 : f32
      %34 = vector.broadcast %cst_19 : f32 to vector<64x16xf32>
      %35 = arith.maximumf %33, %34 : vector<64x16xf32>
      %c0_20 = arith.constant 0 : index
      %c0_21 = arith.constant 0 : index
      %36 = vector.load %arg12[%c0_20, %c0_21] : memref<1x16xf32, #tpu.memory_space<vmem>>, vector<1x16xf32>
      %cst_22 = arith.constant dense<0.000000e+00> : vector<16xf32>
      %37 = vector.multi_reduction <add>, %35, %cst_22 [0] : vector<64x16xf32> to vector<16xf32>
      %38 = vector.shape_cast %37 : vector<16xf32> to vector<1x16xf32>
      %39 = arith.addf %36, %38 : vector<1x16xf32>
      %c0_23 = arith.constant 0 : index
      %c0_24 = arith.constant 0 : index
      %40 = vector.load %arg12[%c0_23, %c0_24] : memref<1x16xf32, #tpu.memory_space<vmem>>, vector<1x16xf32>
      tpu.vector_store %arg12[%c0_23, %c0_24], %39 {strides = array<i32>} : memref<1x16xf32, #tpu.memory_space<vmem>>, vector<1x16xf32>,
      %c1_i32_25 = arith.constant 1 : i32
      %41 = arith.cmpi eq, %arg1, %c1_i32_25 : i32
      %42 = arith.extui %41 : i1 to i32
      %c0_i32_26 = arith.constant 0 : i32
      %43 = arith.cmpi ne, %42, %c0_i32_26 : i32
      scf.if %43 {
        %c0_27 = arith.constant 0 : index
        %c0_28 = arith.constant 0 : index
        %44 = vector.load %arg12[%c0_27, %c0_28] : memref<1x16xf32, #tpu.memory_space<vmem>>, vector<1x16xf32>
        %cst_29 = arith.constant 7.812500e-03 : f32
        %45 = vector.broadcast %cst_29 : f32 to vector<1x16xf32>
        %46 = arith.mulf %44, %45 : vector<1x16xf32>
        %c0_30 = arith.constant 0 : index
        %c0_31 = arith.constant 0 : index
        %47 = vector.load %arg8[%c0_30, %c0_31] : memref<16x4xf32, #tpu.memory_space<vmem>>, vector<16x4xf32>
        %cst_32 = arith.constant dense<0.000000e+00> : vector<1x4xf32>
        %48 = tpu.matmul %46, %47, %cst_32 {dimension_numbers = #tpu.dot_dimension_numbers<[1], [0], [0], [1], [0, 0, 1, 1], [], []>} : vector<1x16xf32>, vector<16x4xf32>, vector<1x4xf32> -> vector<1x4xf32>
        %c0_33 = arith.constant 0 : index
        %c0_34 = arith.constant 0 : index
        %49 = vector.load %arg9[%c0_33, %c0_34] : memref<1x4xf32, #tpu.memory_space<vmem>>, vector<1x4xf32>
        %50 = arith.addf %48, %49 : vector<1x4xf32>
        %cst_35 = arith.constant dense<0xFF800000> : vector<1xf32>
        %51 = vector.multi_reduction <maximumf>, %50, %cst_35 [1] : vector<1x4xf32> to vector<1xf32>
        %52 = vector.shape_cast %51 : vector<1xf32> to vector<1x1xf32>
        %53 = vector.broadcast %52 : vector<1x1xf32> to vector<1x4xf32>
        %54 = arith.subf %50, %53 : vector<1x4xf32>
        %55 = math.exp %54 : vector<1x4xf32>
        %cst_36 = arith.constant dense<0.000000e+00> : vector<1xf32>
        %56 = vector.multi_reduction <add>, %55, %cst_36 [1] : vector<1x4xf32> to vector<1xf32>
        %57 = vector.shape_cast %56 : vector<1xf32> to vector<1x1xf32>
        %58 = tpu.reciprocal %57 : vector<1x1xf32> -> vector<1x1xf32>
        %59 = vector.broadcast %58 : vector<1x1xf32> to vector<1x4xf32>
        %60 = arith.mulf %55, %59 : vector<1x4xf32>
        %c0_37 = arith.constant 0 : index
        %c0_38 = arith.constant 0 : index
        %61 = vector.load %arg10[%c0_37, %c0_38] : memref<1x4xf32, #tpu.memory_space<vmem>>, vector<1x4xf32>
        tpu.vector_store %arg10[%c0_37, %c0_38], %60 {strides = array<i32>} : memref<1x4xf32, #tpu.memory_space<vmem>>, vector<1x4xf32>,
      } else {
      }
    } else {
    }
    return
  }
  func.func @transform_0(%arg0: i32, %arg1: i32) -> (i32, i32) {
    %c0_i32 = arith.constant 0 : i32
    %c0_i32_0 = arith.constant 0 : i32
    %c0_i32_1 = arith.constant 0 : i32
    return %c0_i32, %c0_i32_0 : i32, i32
  }
  func.func @transform_1(%arg0: i32, %arg1: i32) -> (i32, i32) {
    %c0_i32 = arith.constant 0 : i32
    %c0_i32_0 = arith.constant 0 : i32
    return %arg1, %c0_i32 : i32, i32
  }
  func.func @transform_2(%arg0: i32, %arg1: i32) -> (i32, i32) {
    %c0_i32 = arith.constant 0 : i32
    %c0_i32_0 = arith.constant 0 : i32
    %c0_i32_1 = arith.constant 0 : i32
    return %c0_i32, %c0_i32_0 : i32, i32
  }
  func.func @transform_3(%arg0: i32, %arg1: i32) -> (i32, i32) {
    %c0_i32 = arith.constant 0 : i32
    %c0_i32_0 = arith.constant 0 : i32
    %c0_i32_1 = arith.constant 0 : i32
    return %c0_i32, %c0_i32_0 : i32, i32
  }
  func.func @transform_4(%arg0: i32, %arg1: i32) -> (i32, i32) {
    %c0_i32 = arith.constant 0 : i32
    %c0_i32_0 = arith.constant 0 : i32
    %c0_i32_1 = arith.constant 0 : i32
    return %c0_i32, %c0_i32_0 : i32, i32
  }
  func.func @transform_5(%arg0: i32, %arg1: i32) -> (i32, i32) {
    %c0_i32 = arith.constant 0 : i32
    %c0_i32_0 = arith.constant 0 : i32
    %c0_i32_1 = arith.constant 0 : i32
    return %c0_i32, %c0_i32_0 : i32, i32
  }
  func.func @transform_6(%arg0: i32, %arg1: i32) -> (i32, i32) {
    %c0_i32 = arith.constant 0 : i32
    %c0_i32_0 = arith.constant 0 : i32
    %c0_i32_1 = arith.constant 0 : i32
    return %c0_i32, %c0_i32_0 : i32, i32
  }
  func.func @transform_7(%arg0: i32, %arg1: i32) -> (i32, i32) {
    %c0_i32 = arith.constant 0 : i32
    %c0_i32_0 = arith.constant 0 : i32
    %c0_i32_1 = arith.constant 0 : i32
    return %c0_i32, %c0_i32_0 : i32, i32
  }
  func.func @transform_8(%arg0: i32, %arg1: i32) -> (i32, i32) {
    %c0_i32 = arith.constant 0 : i32
    %c0_i32_0 = arith.constant 0 : i32
    %c0_i32_1 = arith.constant 0 : i32
    return %c0_i32, %c0_i32_0 : i32, i32
  }
}

</mosaic_0001>

<llo_original>
// kernel: tpu_custom_call.1
$region0: #{tpu_custom_call.1}
  #allocation0 [shape = 'u32[]', space=smem, size = 0x4, offset = 0x4, fixed_abs, tag = 'smem constant byte address 0x4 - core index']
  #allocation1 [shape = 'u32[144,128]{1,0:T(1,128)}', space=vmem, size = 0x12000, scoped, tag = 'internal scratch']
  #allocation2 [shape = 'f32[128,16]{1,0:T(8,128)}', space=vmem, size = 0x10000, scoped, tag = 'scratch operand']
  #allocation3 [shape = 'f32[1,16]{1,0:T(1,128)}', space=vmem, size = 0x200, scoped, tag = 'scratch operand']
  %s0 = inlined_call_operand.hbm [shape: f32[128,8], index: 0, kind: input, shape index: {}]
  %s1 = inlined_call_operand.hbm [shape: bf16[384,128], index: 1, kind: input, shape index: {}]
  %s2 = inlined_call_operand.hbm [shape: f32[32,16], index: 2, kind: input, shape index: {}]
  %s3 = inlined_call_operand.hbm [shape: f32[1,16], index: 3, kind: input, shape index: {}]
  %s4 = inlined_call_operand.hbm [shape: f32[64,16], index: 4, kind: input, shape index: {}]
  %s5 = inlined_call_operand.hbm [shape: f32[1,16], index: 5, kind: input, shape index: {}]
  %s6 = inlined_call_operand.hbm [shape: f32[16,4], index: 6, kind: input, shape index: {}]
  %s7 = inlined_call_operand.hbm [shape: f32[1,4], index: 7, kind: input, shape index: {}]
  %s8 = inlined_call_operand.hbm [shape: f32[1,4], index: 8, kind: output, shape index: {}]
  %s9 = sld [smem:[#allocation0]]
  $region113: #{tpu_custom_call.1} parent=0
    _
  %s11 = ssub.s32 1, %s9
  %s12 = scalar_select 0, %s11, %s9
  $region1: #{tpu_custom_call.1} parent=0
    #allocation4 [shape = 'u8[65536]{0}', space=vmem, size = 0x10000, scoped, tag = 'input window, operand 0, single buffered']
    #allocation5 [shape = 's32[2]{0}', space=sflag, size = 0x8, scoped, tag = 'scoped memory for tpu_custom_call.1']
    #allocation6 [shape = 's32[2]{0}', space=sflag, size = 0x8, scoped, tag = 'scoped memory for tpu_custom_call.1']
    #allocation7 [shape = 'u8[98304]{0}', space=vmem, size = 0x18000, scoped, tag = 'input window, operand 1']
    #allocation8 [shape = 's32[2]{0}', space=sflag, size = 0x8, scoped, tag = 'scoped memory for tpu_custom_call.1']
    #allocation9 [shape = 'u8[16384]{0}', space=vmem, size = 0x4000, scoped, tag = 'input window, operand 2, single buffered']
    #allocation10 [shape = 'u8[512]{0}', space=vmem, size = 0x400, scoped, tag = 'input window, operand 3, single buffered']
    #allocation11 [shape = 's32[1]{0}', space=sflag, size = 0x4, scoped, tag = 'scoped memory for tpu_custom_call.1']
    #allocation12 [shape = 'u8[32768]{0}', space=vmem, size = 0x8000, scoped, tag = 'input window, operand 4, single buffered']
    #allocation13 [shape = 'u8[512]{0}', space=vmem, size = 0x400, scoped, tag = 'input window, operand 5, single buffered']
    #allocation14 [shape = 's32[1]{0}', space=sflag, size = 0x4, scoped, tag = 'scoped memory for tpu_custom_call.1']
    #allocation15 [shape = 'u8[8192]{0}', space=vmem, size = 0x2000, scoped, tag = 'input window, operand 6, single buffered']
    #allocation16 [shape = 'u8[512]{0}', space=vmem, size = 0x400, scoped, tag = 'input window, operand 7, single buffered']
    #allocation17 [shape = 's32[1]{0}', space=sflag, size = 0x4, scoped, tag = 'scoped memory for tpu_custom_call.1']
    #allocation18 [shape = 'u8[512]{0}', space=vmem, size = 0x400, scoped, tag = 'output window, operand 0, single buffered']
    %13 = vsyncpa [#allocation5], 0
    %14 = vsyncpa [#allocation8], 0
    %s15 = scalar_lea.sflag [#allocation8], 1
    %16 = vsyncpa %s15, 0
    %17 = vsyncpa [#allocation11], 0
    %18 = vsyncpa [#allocation14], 0
    %19 = vsyncpa [#allocation17], 0
    %20 = vsyncpa [#allocation6], 0
    loop: start=0, step=1, limit=6
    $region2: #{tpu_custom_call.1} parent=1 // loop_pre_header
      _
    $region3: #{tpu_custom_call.1} parent=1 // loop_header
      %s22 = sphi 0, %s26
      %p23 = scmp.ge.s32.totalorder %s22, 6
      %s29 = sphi 0, %s41
      %s30 = sphi 0, %s37
      %s31 = sphi 0, %s29
      %s32 = sphi 0, %s30
      %s33 = sphi 0, %s31
      %s34 = sphi 0, %s32
      %s42 = sphi 0, %s42
      %s44 = sphi 0, %s42
      %s45 = sphi 0, %s44
      %s59 = sphi 0, %s45
      %s65 = sphi 0, %s67
      %s68 = sphi 0, %s65
      %s69 = sphi 0, %s68
      %s85 = sphi 0, %s69
      %s89 = sphi 0, %s89
      %s91 = sphi 0, %s89
      %s92 = sphi 0, %s91
      %s106 = sphi 0, %s92
      %s110 = sphi 0, %s110
      %s112 = sphi 0, %s110
      %s113 = sphi 0, %s112
      %s127 = sphi 0, %s113
      %s131 = sphi 0, %s131
      %s133 = sphi 0, %s131
      %s134 = sphi 0, %s133
      %s148 = sphi 0, %s134
      %s152 = sphi 0, %s152
      %s154 = sphi 0, %s152
      %s155 = sphi 0, %s154
      %s169 = sphi 0, %s155
      %s173 = sphi 0, %s173
      %s175 = sphi 0, %s173
      %s176 = sphi 0, %s175
      %s190 = sphi 0, %s176
      %s194 = sphi 0, %s194
      %s196 = sphi 0, %s194
      %s197 = sphi 0, %s196
      %s211 = sphi 0, %s197
      %s215 = sphi 0, %s215
      %s217 = sphi 0, %s215
      %s218 = sphi 0, %s217
      %s232 = sphi 0, %s218
    $region4: #{tpu_custom_call.1} parent=1 // loop_header_branch
      %25 = sbr.rel (%p23) target = $region8
    $region5: #{tpu_custom_call.1} parent=1 // loop_body
      %s27 = ssub.s32 %s22, 1
      %s28 = ssub.s32 %s22, 2
      %s35 = sadd.s32 1, %s30
      %p36 = scmp.ge.s32.totalorder %s35, 2
      %s37 = scalar_select %p36, 0, %s35
      %s38 = sadd.s32 1, %s29
      %s39 = scalar_select %p36, %s38, %s29
      %p40 = scmp.ge.s32.totalorder %s39, 2
      %s41 = scalar_select %p40, 0, %s39
      %s43 = sadd.s32 %s42, 1
      %p46 = scmp.eq.s32.totalorder %s22, 3
      %p47 = scmp.ne.s32.totalorder %s42, %s44
      %p48 = scmp.eq.s32.totalorder %s22, 0
      %p49 = por %p47, %p48
      %p50 = scmp.ne.s32.totalorder %s42, %s44
      %p51 = scmp.eq.s32.totalorder %s27, 3
      %p52 = por %p50, %p51
      %p53 = scmp.ne.s32.totalorder %s44, %s45
      %p54 = scmp.eq.s32.totalorder %s27, 0
      %p55 = por %p53, %p54
      %p56 = scmp.ne.s32.totalorder %s44, %s45
      %p57 = scmp.eq.s32.totalorder %s28, 3
      %p58 = por %p56, %p57
      %p60 = scmp.ne.s32.totalorder %s45, %s59
      %p61 = scmp.eq.s32.totalorder %s28, 0
      %p62 = por %p60, %p61
      %s63 = ssub.s32 %s30, %s37
      %p64 = scmp.eq.s32.totalorder %s63, 0
      %s66 = sadd.s32 %s65, 1
      %s67 = scalar_select %p64, %s65, %s66
      %p70 = pneg %p64
      %p71 = scmp.eq.s32.totalorder %s22, 3
      %p72 = por %p70, %p71
      %p73 = scmp.ne.s32.totalorder %s65, %s68
      %p74 = scmp.eq.s32.totalorder %s22, 0
      %p75 = por %p73, %p74
      %p76 = scmp.ne.s32.totalorder %s65, %s68
      %p77 = scmp.eq.s32.totalorder %s27, 3
      %p78 = por %p76, %p77
      %p79 = scmp.ne.s32.totalorder %s68, %s69
      %p80 = scmp.eq.s32.totalorder %s27, 0
      %p81 = por %p79, %p80
      %p82 = scmp.ne.s32.totalorder %s68, %s69
      %p83 = scmp.eq.s32.totalorder %s28, 3
      %p84 = por %p82, %p83
      %p86 = scmp.ne.s32.totalorder %s69, %s85
      %p87 = scmp.eq.s32.totalorder %s28, 0
      %p88 = por %p86, %p87
      %s90 = sadd.s32 %s89, 1
      %p93 = scmp.eq.s32.totalorder %s22, 3
      %p94 = scmp.ne.s32.totalorder %s89, %s91
      %p95 = scmp.eq.s32.totalorder %s22, 0
      %p96 = por %p94, %p95
      %p97 = scmp.ne.s32.totalorder %s89, %s91
      %p98 = scmp.eq.s32.totalorder %s27, 3
      %p99 = por %p97, %p98
      %p100 = scmp.ne.s32.totalorder %s91, %s92
      %p101 = scmp.eq.s32.totalorder %s27, 0
      %p102 = por %p100, %p101
      %p103 = scmp.ne.s32.totalorder %s91, %s92
      %p104 = scmp.eq.s32.totalorder %s28, 3
      %p105 = por %p103, %p104
      %p107 = scmp.ne.s32.totalorder %s92, %s106
      %p108 = scmp.eq.s32.totalorder %s28, 0
      %p109 = por %p107, %p108
      %s111 = sadd.s32 %s110, 1
      %p114 = scmp.eq.s32.totalorder %s22, 3
      %p115 = scmp.ne.s32.totalorder %s110, %s112
      %p116 = scmp.eq.s32.totalorder %s22, 0
      %p117 = por %p115, %p116
      %p118 = scmp.ne.s32.totalorder %s110, %s112
      %p119 = scmp.eq.s32.totalorder %s27, 3
      %p120 = por %p118, %p119
      %p121 = scmp.ne.s32.totalorder %s112, %s113
      %p122 = scmp.eq.s32.totalorder %s27, 0
      %p123 = por %p121, %p122
      %p124 = scmp.ne.s32.totalorder %s112, %s113
      %p125 = scmp.eq.s32.totalorder %s28, 3
      %p126 = por %p124, %p125
      %p128 = scmp.ne.s32.totalorder %s113, %s127
      %p129 = scmp.eq.s32.totalorder %s28, 0
      %p130 = por %p128, %p129
      %s132 = sadd.s32 %s131, 1
      %p135 = scmp.eq.s32.totalorder %s22, 3
      %p136 = scmp.ne.s32.totalorder %s131, %s133
      %p137 = scmp.eq.s32.totalorder %s22, 0
      %p138 = por %p136, %p137
      %p139 = scmp.ne.s32.totalorder %s131, %s133
      %p140 = scmp.eq.s32.totalorder %s27, 3
      %p141 = por %p139, %p140
      %p142 = scmp.ne.s32.totalorder %s133, %s134
      %p143 = scmp.eq.s32.totalorder %s27, 0
      %p144 = por %p142, %p143
      %p145 = scmp.ne.s32.totalorder %s133, %s134
      %p146 = scmp.eq.s32.totalorder %s28, 3
      %p147 = por %p145, %p146
      %p149 = scmp.ne.s32.totalorder %s134, %s148
      %p150 = scmp.eq.s32.totalorder %s28, 0
      %p151 = por %p149, %p150
      %s153 = sadd.s32 %s152, 1
      %p156 = scmp.eq.s32.totalorder %s22, 3
      %p157 = scmp.ne.s32.totalorder %s152, %s154
      %p158 = scmp.eq.s32.totalorder %s22, 0
      %p159 = por %p157, %p158
      %p160 = scmp.ne.s32.totalorder %s152, %s154
      %p161 = scmp.eq.s32.totalorder %s27, 3
      %p162 = por %p160, %p161
      %p163 = scmp.ne.s32.totalorder %s154, %s155
      %p164 = scmp.eq.s32.totalorder %s27, 0
      %p165 = por %p163, %p164
      %p166 = scmp.ne.s32.totalorder %s154, %s155
      %p167 = scmp.eq.s32.totalorder %s28, 3
      %p168 = por %p166, %p167
      %p170 = scmp.ne.s32.totalorder %s155, %s169
      %p171 = scmp.eq.s32.totalorder %s28, 0
      %p172 = por %p170, %p171
      %s174 = sadd.s32 %s173, 1
      %p177 = scmp.eq.s32.totalorder %s22, 3
      %p178 = scmp.ne.s32.totalorder %s173, %s175
      %p179 = scmp.eq.s32.totalorder %s22, 0
      %p180 = por %p178, %p179
      %p181 = scmp.ne.s32.totalorder %s173, %s175
      %p182 = scmp.eq.s32.totalorder %s27, 3
      %p183 = por %p181, %p182
      %p184 = scmp.ne.s32.totalorder %s175, %s176
      %p185 = scmp.eq.s32.totalorder %s27, 0
      %p186 = por %p184, %p185
      %p187 = scmp.ne.s32.totalorder %s175, %s176
      %p188 = scmp.eq.s32.totalorder %s28, 3
      %p189 = por %p187, %p188
      %p191 = scmp.ne.s32.totalorder %s176, %s190
      %p192 = scmp.eq.s32.totalorder %s28, 0
      %p193 = por %p191, %p192
      %s195 = sadd.s32 %s194, 1
      %p198 = scmp.eq.s32.totalorder %s22, 3
      %p199 = scmp.ne.s32.totalorder %s194, %s196
      %p200 = scmp.eq.s32.totalorder %s22, 0
      %p201 = por %p199, %p200
      %p202 = scmp.ne.s32.totalorder %s194, %s196
      %p203 = scmp.eq.s32.totalorder %s27, 3
      %p204 = por %p202, %p203
      %p205 = scmp.ne.s32.totalorder %s196, %s197
      %p206 = scmp.eq.s32.totalorder %s27, 0
      %p207 = por %p205, %p206
      %p208 = scmp.ne.s32.totalorder %s196, %s197
      %p209 = scmp.eq.s32.totalorder %s28, 3
      %p210 = por %p208, %p209
      %p212 = scmp.ne.s32.totalorder %s197, %s211
      %p213 = scmp.eq.s32.totalorder %s28, 0
      %p214 = por %p212, %p213
      %s216 = sadd.s32 %s215, 1
      %p219 = scmp.eq.s32.totalorder %s22, 3
      %p220 = scmp.ne.s32.totalorder %s215, %s217
      %p221 = scmp.eq.s32.totalorder %s22, 0
      %p222 = por %p220, %p221
      %p223 = scmp.ne.s32.totalorder %s215, %s217
      %p224 = scmp.eq.s32.totalorder %s27, 3
      %p225 = por %p223, %p224
      %p226 = scmp.ne.s32.totalorder %s217, %s218
      %p227 = scmp.eq.s32.totalorder %s27, 0
      %p228 = por %p226, %p227
      %p229 = scmp.ne.s32.totalorder %s217, %s218
      %p230 = scmp.eq.s32.totalorder %s28, 3
      %p231 = por %p229, %p230
      %p233 = scmp.ne.s32.totalorder %s218, %s232
      %p234 = scmp.eq.s32.totalorder %s28, 0
      %p235 = por %p233, %p234
      %p236 = scmp.le.s32.totalorder 1, %s22
      %p237 = scmp.lt.s32.totalorder %s22, 5
      %p238 = pnand %p236, %p237
      %p239 = pneg %p238
      // Predicated region
      $region9: #{tpu_custom_call.1} parent=5 // pred_check
        _
      $region10: #{tpu_custom_call.1} parent=5 // pred_check_branch
        %241 = sbr.rel (%p238) target = $region12
      $region11: #{tpu_custom_call.1} parent=5 // pred_region
        %s242 = ssub.s32 %s22, 1
        // Predicated region
        $region13: #{tpu_custom_call.1} parent=11 // pred_check
          %p243 = pneg %p55
        $region14: #{tpu_custom_call.1} parent=11 // pred_check_branch
          %245 = sbr.rel (%p243) target = $region16
        $region15: #{tpu_custom_call.1} parent=11 // pred_region
          %s247 = ssub.s32 2048, 2048
          %248 = vsyncadd [#allocation5], %s247
          %s249 = sshll.u32 [#allocation4], 4
          %s250 = int_to_ptr.vmem [resolvable:$true] %s249
          %255 = dma.hbm_to_vmem [thread:$0]  %s0, 2048, %s250, [#allocation5], 128, 128, 8
        $region16: #{tpu_custom_call.1} parent=11 // pred_fallthru
          _
        // Predicated region
        $region17: #{tpu_custom_call.1} parent=11 // pred_check
          %p256 = pneg %p102
        $region18: #{tpu_custom_call.1} parent=11 // pred_check_branch
          %258 = sbr.rel (%p256) target = $region20
        $region19: #{tpu_custom_call.1} parent=11 // pred_region
          %s260 = ssub.s32 512, 512
          %261 = vsyncadd [#allocation8], %s260
          %s262 = sshll.u32 [#allocation9], 4
          %s263 = int_to_ptr.vmem [resolvable:$true] %s262
          %268 = dma.hbm_to_vmem [thread:$0]  %s2, 512, %s263, [#allocation8], 128, 128, 8
        $region20: #{tpu_custom_call.1} parent=11 // pred_fallthru
          _
        // Predicated region
        $region21: #{tpu_custom_call.1} parent=11 // pred_check
          %p269 = pneg %p123
        $region22: #{tpu_custom_call.1} parent=11 // pred_check_branch
          %271 = sbr.rel (%p269) target = $region24
        $region23: #{tpu_custom_call.1} parent=11 // pred_region
          %s273 = ssub.s32 16, 16
          %274 = vsyncadd [#allocation11], %s273
          %s276 = sshll.u32 [#allocation10], 4
          %s277 = int_to_ptr.vmem [resolvable:$true] %s276
          %279 = dma.hbm_to_vmem [thread:$0]  %s3, 16, %s277, [#allocation11]
        $region24: #{tpu_custom_call.1} parent=11 // pred_fallthru
          _
        // Predicated region
        $region25: #{tpu_custom_call.1} parent=11 // pred_check
          %p280 = pneg %p144
        $region26: #{tpu_custom_call.1} parent=11 // pred_check_branch
          %282 = sbr.rel (%p280) target = $region28
        $region27: #{tpu_custom_call.1} parent=11 // pred_region
          %s284 = ssub.s32 1024, 1024
          %285 = vsyncadd [#allocation11], %s284
          %s286 = sshll.u32 [#allocation12], 4
          %s287 = int_to_ptr.vmem [resolvable:$true] %s286
          %292 = dma.hbm_to_vmem [thread:$0]  %s4, 1024, %s287, [#allocation11], 128, 128, 8
        $region28: #{tpu_custom_call.1} parent=11 // pred_fallthru
          _
        // Predicated region
        $region29: #{tpu_custom_call.1} parent=11 // pred_check
          %p293 = pneg %p165
        $region30: #{tpu_custom_call.1} parent=11 // pred_check_branch
          %295 = sbr.rel (%p293) target = $region32
        $region31: #{tpu_custom_call.1} parent=11 // pred_region
          %s297 = ssub.s32 16, 16
          %298 = vsyncadd [#allocation14], %s297
          %s300 = sshll.u32 [#allocation13], 4
          %s301 = int_to_ptr.vmem [resolvable:$true] %s300
          %303 = dma.hbm_to_vmem [thread:$0]  %s5, 16, %s301, [#allocation14]
        $region32: #{tpu_custom_call.1} parent=11 // pred_fallthru
          _
        // Predicated region
        $region33: #{tpu_custom_call.1} parent=11 // pred_check
          %p304 = pneg %p186
        $region34: #{tpu_custom_call.1} parent=11 // pred_check_branch
          %306 = sbr.rel (%p304) target = $region36
        $region35: #{tpu_custom_call.1} parent=11 // pred_region
          %s308 = ssub.s32 256, 256
          %309 = vsyncadd [#allocation14], %s308
          %s310 = sshll.u32 [#allocation15], 4
          %s311 = int_to_ptr.vmem [resolvable:$true] %s310
          %316 = dma.hbm_to_vmem [thread:$0]  %s6, 256, %s311, [#allocation14], 128, 128, 8
        $region36: #{tpu_custom_call.1} parent=11 // pred_fallthru
          _
        // Predicated region
        $region37: #{tpu_custom_call.1} parent=11 // pred_check
          %p317 = pneg %p207
        $region38: #{tpu_custom_call.1} parent=11 // pred_check_branch
          %319 = sbr.rel (%p317) target = $region40
        $region39: #{tpu_custom_call.1} parent=11 // pred_region
          %s321 = ssub.s32 16, 16
          %322 = vsyncadd [#allocation17], %s321
          %s324 = sshll.u32 [#allocation16], 4
          %s325 = int_to_ptr.vmem [resolvable:$true] %s324
          %327 = dma.hbm_to_vmem [thread:$0]  %s7, 16, %s325, [#allocation17]
        $region40: #{tpu_custom_call.1} parent=11 // pred_fallthru
          _
      $region12: #{tpu_custom_call.1} parent=5 // pred_fallthru
        _
      %p328 = scmp.lt.s32.totalorder %s22, 4
      // Predicated region
      $region41: #{tpu_custom_call.1} parent=5 // pred_check
        %p329 = pneg %p328
      $region42: #{tpu_custom_call.1} parent=5 // pred_check_branch
        %331 = sbr.rel (%p329) target = $region44
      $region43: #{tpu_custom_call.1} parent=5 // pred_region
        // Predicated region
        $region45: #{tpu_custom_call.1} parent=43 // pred_check
          %p332 = pneg %p75
        $region46: #{tpu_custom_call.1} parent=43 // pred_check_branch
          %334 = sbr.rel (%p332) target = $region48
        $region47: #{tpu_custom_call.1} parent=43 // pred_region
          %s335 = sand.u32 %s22, 1
          %s336 = scalar_lea.sflag [#allocation8], %s335
          %s337 = sand.u32 %s65, 1
          %s338 = smul.addr %s337, 96
          %s339 = scalar_lea.vmem [#allocation7], %s338
          %s340 = smul.u32 24, %s30
          %s342 = ssub.s32 1536, 1536
          %343 = vsyncadd %s336, %s342
          %s344 = smul.addr %s340, 64
          %s345 = scalar_lea.hbm %s1, %s344
          %s346 = sshll.u32 %s339, 4
          %s347 = int_to_ptr.vmem [resolvable:$true] %s346
          %352 = dma.hbm_to_vmem [thread:$0]  %s345, 1536, %s347, %s336, 64, 64, 4
        $region48: #{tpu_custom_call.1} parent=43 // pred_fallthru
          _
      $region44: #{tpu_custom_call.1} parent=5 // pred_fallthru
        _
      %p353 = scmp.le.s32.totalorder 1, %s22
      %p354 = scmp.lt.s32.totalorder %s22, 5
      %p355 = pnand %p353, %p354
      %p356 = pneg %p355
      // Predicated region
      $region49: #{tpu_custom_call.1} parent=5 // pred_check
        _
      $region50: #{tpu_custom_call.1} parent=5 // pred_check_branch
        %358 = sbr.rel (%p355) target = $region52
      $region51: #{tpu_custom_call.1} parent=5 // pred_region
        %s359 = ssub.s32 %s22, 1
        // Predicated region
        $region53: #{tpu_custom_call.1} parent=51 // pred_check
          %p360 = pneg %p55
        $region54: #{tpu_custom_call.1} parent=51 // pred_check_branch
          %362 = sbr.rel (%p360) target = $region56
        $region55: #{tpu_custom_call.1} parent=51 // pred_region
          %363 = dma.done [#allocation5], 2048
        $region56: #{tpu_custom_call.1} parent=51 // pred_fallthru
          _
        %s364 = sand.u32 %s27, 1
        %s365 = scalar_lea.sflag [#allocation8], %s364
        %s366 = sand.u32 %s68, 1
        %s367 = smul.addr %s366, 96
        %s368 = scalar_lea.vmem [#allocation7], %s367
        // Predicated region
        $region57: #{tpu_custom_call.1} parent=51 // pred_check
          %p369 = pneg %p81
        $region58: #{tpu_custom_call.1} parent=51 // pred_check_branch
          %371 = sbr.rel (%p369) target = $region60
        $region59: #{tpu_custom_call.1} parent=51 // pred_region
          %372 = dma.done %s365, 1536
        $region60: #{tpu_custom_call.1} parent=51 // pred_fallthru
          _
        // Predicated region
        $region61: #{tpu_custom_call.1} parent=51 // pred_check
          %p373 = pneg %p102
        $region62: #{tpu_custom_call.1} parent=51 // pred_check_branch
          %375 = sbr.rel (%p373) target = $region64
        $region63: #{tpu_custom_call.1} parent=51 // pred_region
          %376 = dma.done [#allocation8], 512
        $region64: #{tpu_custom_call.1} parent=51 // pred_fallthru
          _
        // Predicated region
        $region65: #{tpu_custom_call.1} parent=51 // pred_check
          %p377 = pneg %p123
        $region66: #{tpu_custom_call.1} parent=51 // pred_check_branch
          %379 = sbr.rel (%p377) target = $region68
        $region67: #{tpu_custom_call.1} parent=51 // pred_region
          %380 = dma.done [#allocation11], 16
        $region68: #{tpu_custom_call.1} parent=51 // pred_fallthru
          _
        // Predicated region
        $region69: #{tpu_custom_call.1} parent=51 // pred_check
          %p381 = pneg %p144
        $region70: #{tpu_custom_call.1} parent=51 // pred_check_branch
          %383 = sbr.rel (%p381) target = $region72
        $region71: #{tpu_custom_call.1} parent=51 // pred_region
          %384 = dma.done [#allocation11], 1024
        $region72: #{tpu_custom_call.1} parent=51 // pred_fallthru
          _
        // Predicated region
        $region73: #{tpu_custom_call.1} parent=51 // pred_check
          %p385 = pneg %p165
        $region74: #{tpu_custom_call.1} parent=51 // pred_check_branch
          %387 = sbr.rel (%p385) target = $region76
        $region75: #{tpu_custom_call.1} parent=51 // pred_region
          %388 = dma.done [#allocation14], 16
        $region76: #{tpu_custom_call.1} parent=51 // pred_fallthru
          _
        // Predicated region
        $region77: #{tpu_custom_call.1} parent=51 // pred_check
          %p389 = pneg %p186
        $region78: #{tpu_custom_call.1} parent=51 // pred_check_branch
          %391 = sbr.rel (%p389) target = $region80
        $region79: #{tpu_custom_call.1} parent=51 // pred_region
          %392 = dma.done [#allocation14], 256
        $region80: #{tpu_custom_call.1} parent=51 // pred_fallthru
          _
        // Predicated region
        $region81: #{tpu_custom_call.1} parent=51 // pred_check
          %p393 = pneg %p207
        $region82: #{tpu_custom_call.1} parent=51 // pred_check_branch
          %395 = sbr.rel (%p393) target = $region84
        $region83: #{tpu_custom_call.1} parent=51 // pred_region
          %396 = dma.done [#allocation17], 16
        $region84: #{tpu_custom_call.1} parent=51 // pred_fallthru
          _
        %p397 = pneg %p55
        %p398 = pneg %p52
        %s399 = sand.u32 %s27, 1
        %s400 = scalar_lea.sflag [#allocation8], %s399
        %s401 = sand.u32 %s68, 1
        %s402 = smul.addr %s401, 96
        %s403 = scalar_lea.vmem [#allocation7], %s402
        %p404 = pneg %p81
        %p405 = pneg %p78
        %p406 = pneg %p102
        %p407 = pneg %p99
        %p408 = pneg %p123
        %p409 = pneg %p120
        %p410 = pneg %p144
        %p411 = pneg %p141
        %p412 = pneg %p165
        %p413 = pneg %p162
        %p414 = pneg %p186
        %p415 = pneg %p183
        %p416 = pneg %p207
        %p417 = pneg %p204
        %p418 = pneg %p228
        %p419 = pneg %p225
        %s420 = smul.u32 24, %s32
        %s421 = smul.u32 %s32, 64
        %v422 = vld [vmem:[%s368] sm:$0xf]
        %v423 = vld [vmem:[%s368 + $0x4] sm:$0xf]
        %v424 = vld [vmem:[%s368 + $0x8] sm:$0xf]
        %v425 = vld [vmem:[%s368 + $0xc] sm:$0xf]
        %v426 = vld [vmem:[%s368 + $0x10] sm:$0xf]
        %v427 = vld [vmem:[%s368 + $0x14] sm:$0xf]
        %v428 = vld [vmem:[%s368 + $0x18] sm:$0xf]
        %v429 = vld [vmem:[%s368 + $0x1c] sm:$0xf]
        %v430 = vld [vmem:[%s368 + $0x20] sm:$0xf]
        %v431 = vld [vmem:[%s368 + $0x24] sm:$0xf]
        %v432 = vld [vmem:[%s368 + $0x28] sm:$0xf]
        %v433 = vld [vmem:[%s368 + $0x2c] sm:$0xf]
        %v434 = vld [vmem:[%s368 + $0x30] sm:$0xf]
        %v435 = vld [vmem:[%s368 + $0x34] sm:$0xf]
        %v436 = vld [vmem:[%s368 + $0x38] sm:$0xf]
        %v437 = vld [vmem:[%s368 + $0x3c] sm:$0xf]
        %v438 = vld [vmem:[%s368 + $0x40] sm:$0xf]
        %v439 = vld [vmem:[%s368 + $0x44] sm:$0xf]
        %v440 = vld [vmem:[%s368 + $0x48] sm:$0xf]
        %v441 = vld [vmem:[%s368 + $0x4c] sm:$0xf]
        %v442 = vld [vmem:[%s368 + $0x50] sm:$0xf]
        %v443 = vld [vmem:[%s368 + $0x54] sm:$0xf]
        %v444 = vld [vmem:[%s368 + $0x58] sm:$0xf]
        %v445 = vld [vmem:[%s368 + $0x5c] sm:$0xf]
        %v446 = vunpack.c.l.bf16 %v422
        %v447 = vunpack.c.l.bf16 %v423
        %v448 = vunpack.c.l.bf16 %v424
        %v449 = vunpack.c.l.bf16 %v425
        %v450 = vunpack.c.l.bf16 %v426
        %v451 = vunpack.c.l.bf16 %v427
        %v452 = vunpack.c.l.bf16 %v428
        %v453 = vunpack.c.l.bf16 %v429
        %v454 = vunpack.c.l.bf16 %v430
        %v455 = vunpack.c.l.bf16 %v431
        %v456 = vunpack.c.l.bf16 %v432
        %v457 = vunpack.c.l.bf16 %v433
        %v458 = vunpack.c.l.bf16 %v434
        %v459 = vunpack.c.l.bf16 %v435
        %v460 = vunpack.c.l.bf16 %v436
        %v461 = vunpack.c.l.bf16 %v437
        %v462 = vunpack.c.l.bf16 %v438
        %v463 = vunpack.c.l.bf16 %v439
        %v464 = vunpack.c.l.bf16 %v440
        %v465 = vunpack.c.l.bf16 %v441
        %v466 = vunpack.c.l.bf16 %v442
        %v467 = vunpack.c.l.bf16 %v443
        %v468 = vunpack.c.l.bf16 %v444
        %v469 = vunpack.c.l.bf16 %v445
        %p470 = scmp.eq.s32.totalorder %s31, 0
        // Predicated region
        $region85: #{tpu_custom_call.1} parent=51 // pred_check
          %p471 = pneg %p470
        $region86: #{tpu_custom_call.1} parent=51 // pred_check_branch
          %473 = sbr.rel (%p471) target = $region88
        $region87: #{tpu_custom_call.1} parent=51 // pred_region
          %v474 = vld [vmem:[#allocation4] sm:$0xff]
          %v475 = vld [vmem:[#allocation4 + $0x8] sm:$0xff]
          %v476 = vld [vmem:[#allocation4 + $0x10] sm:$0xff]
          %v477 = vld [vmem:[#allocation4 + $0x18] sm:$0xff]
          %v478 = vld [vmem:[#allocation4 + $0x20] sm:$0xff]
          %v479 = vld [vmem:[#allocation4 + $0x28] sm:$0xff]
          %v480 = vld [vmem:[#allocation4 + $0x30] sm:$0xff]
          %v481 = vld [vmem:[#allocation4 + $0x38] sm:$0xff]
          %v482 = vld [vmem:[#allocation4 + $0x40] sm:$0xff]
          %v483 = vld [vmem:[#allocation4 + $0x48] sm:$0xff]
          %v484 = vld [vmem:[#allocation4 + $0x50] sm:$0xff]
          %v485 = vld [vmem:[#allocation4 + $0x58] sm:$0xff]
          %v486 = vld [vmem:[#allocation4 + $0x60] sm:$0xff]
          %v487 = vld [vmem:[#allocation4 + $0x68] sm:$0xff]
          %v488 = vld [vmem:[#allocation4 + $0x70] sm:$0xff]
          %v489 = vld [vmem:[#allocation4 + $0x78] sm:$0xff]
          %490 = vmatprep.subr.mxu0 0.0
          %491 = vmatpush1.msra.mxu0 %v474
          %492 = vmatprep.subr.mxu0 0.0
          %493 = vmatpush1.msra.mxu0 %v475
          %494 = vmatprep.subr.mxu0 0.0
          %495 = vmatpush1.msra.mxu0 %v476
          %496 = vmatprep.subr.mxu0 0.0
          %497 = vmatpush1.msra.mxu0 %v477
          %498 = vmatprep.subr.mxu0 0.0
          %499 = vmatpush1.msra.mxu0 %v478
          %500 = vmatprep.subr.mxu0 0.0
          %501 = vmatpush1.msra.mxu0 %v479
          %502 = vmatprep.subr.mxu0 0.0
          %503 = vmatpush1.msra.mxu0 %v480
          %504 = vmatprep.subr.mxu0 0.0
          %505 = vmatpush1.msra.mxu0 %v481
          %506 = vmatprep.subr.mxu0 0.0
          %507 = vmatpush1.msra.mxu0 %v482
          %508 = vmatprep.subr.mxu0 0.0
          %509 = vmatpush1.msra.mxu0 %v483
          %510 = vmatprep.subr.mxu0 0.0
          %511 = vmatpush1.msra.mxu0 %v484
          %512 = vmatprep.subr.mxu0 0.0
          %513 = vmatpush1.msra.mxu0 %v485
          %514 = vmatprep.subr.mxu0 0.0
          %515 = vmatpush1.msra.mxu0 %v486
          %516 = vmatprep.subr.mxu0 0.0
          %517 = vmatpush1.msra.mxu0 %v487
          %518 = vmatprep.subr.mxu0 0.0
          %519 = vmatpush1.msra.mxu0 %v488
          %520 = vmatprep.subr.mxu0 0.0
          %521 = vmatpush1.msra.mxu0 %v489
          %522 = vmatprep.subr.mxu0 0.0
          %523 = vmatpush1.msra.mxu0 0.0
          %524 = vmatprep.subr.mxu0 0.0
          %525 = vmatpush1.msra.mxu0 0.0
          %526 = vmatprep.subr.mxu0 0.0
          %527 = vmatpush1.msra.mxu0 0.0
          %528 = vmatprep.subr.mxu0 0.0
          %529 = vmatpush1.msra.mxu0 0.0
          %530 = vmatprep.subr.mxu0 0.0
          %531 = vmatpush1.msra.mxu0 0.0
          %532 = vmatprep.subr.mxu0 0.0
          %533 = vmatpush1.msra.mxu0 0.0
          %534 = vmatprep.subr.mxu0 0.0
          %535 = vmatpush1.msra.mxu0 0.0
          %536 = vmatprep.subr.mxu0 0.0
          %537 = vmatpush1.msra.mxu0 0.0
          %538 = vmatprep.subr.mxu0 0.0
          %539 = vmatpush1.msra.mxu0 0.0
          %540 = vmatprep.subr.mxu0 0.0
          %541 = vmatpush1.msra.mxu0 0.0
          %542 = vmatprep.subr.mxu0 0.0
          %543 = vmatpush1.msra.mxu0 0.0
          %544 = vmatprep.subr.mxu0 0.0
          %545 = vmatpush1.msra.mxu0 0.0
          %546 = vmatprep.subr.mxu0 0.0
          %547 = vmatpush1.msra.mxu0 0.0
          %548 = vmatprep.subr.mxu0 0.0
          %549 = vmatpush1.msra.mxu0 0.0
          %550 = vmatprep.subr.mxu0 0.0
          %551 = vmatpush1.msra.mxu0 0.0
          %552 = vmatprep.subr.mxu0 0.0
          %553 = vmatpush1.msra.mxu0 0.0
          %554 = vmatprep.mubr.f32.mxu0 0.0
          %555 = vmatmul.mubr.f32.gmra.mrb[0].mxu0 %v446
          %v556 = vpop.f32.mrb[0].mxu0
          %v557 = vadd.f32 0.0, %v556
          %v558 = vpop.f32.mrb[0].mxu0
          %559 = vmatprep.mubr.f32.mxu0 0.0
          %560 = vmatmul.mubr.f32.gmra.mrb[0].mxu0 %v447
          %v561 = vpop.f32.mrb[0].mxu0
          %v562 = vadd.f32 0.0, %v561
          %v563 = vpop.f32.mrb[0].mxu0
          %564 = vmatprep.mubr.f32.mxu0 0.0
          %565 = vmatmul.mubr.f32.gmra.mrb[0].mxu0 %v448
          %v566 = vpop.f32.mrb[0].mxu0
          %v567 = vadd.f32 0.0, %v566
          %v568 = vpop.f32.mrb[0].mxu0
          %569 = vmatprep.mubr.f32.mxu0 0.0
          %570 = vmatmul.mubr.f32.gmra.mrb[0].mxu0 %v449
          %v571 = vpop.f32.mrb[0].mxu0
          %v572 = vadd.f32 0.0, %v571
          %v573 = vpop.f32.mrb[0].mxu0
          %574 = vmatprep.mubr.f32.mxu0 0.0
          %575 = vmatmul.mubr.f32.gmra.mrb[0].mxu0 %v450
          %v576 = vpop.f32.mrb[0].mxu0
          %v577 = vadd.f32 0.0, %v576
          %v578 = vpop.f32.mrb[0].mxu0
          %579 = vmatprep.mubr.f32.mxu0 0.0
          %580 = vmatmul.mubr.f32.gmra.mrb[0].mxu0 %v451
          %v581 = vpop.f32.mrb[0].mxu0
          %v582 = vadd.f32 0.0, %v581
          %v583 = vpop.f32.mrb[0].mxu0
          %584 = vmatprep.mubr.f32.mxu0 0.0
          %585 = vmatmul.mubr.f32.gmra.mrb[0].mxu0 %v452
          %v586 = vpop.f32.mrb[0].mxu0
          %v587 = vadd.f32 0.0, %v586
          %v588 = vpop.f32.mrb[0].mxu0
          %589 = vmatprep.mubr.f32.mxu0 0.0
          %590 = vmatmul.mubr.f32.gmra.mrb[0].mxu0 %v453
          %v591 = vpop.f32.mrb[0].mxu0
          %v592 = vadd.f32 0.0, %v591
          %v593 = vpop.f32.mrb[0].mxu0
          %594 = vmatprep.mubr.f32.mxu0 0.0
          %595 = vmatmul.mubr.f32.gmra.mrb[0].mxu0 %v454
          %v596 = vpop.f32.mrb[0].mxu0
          %v597 = vadd.f32 0.0, %v596
          %v598 = vpop.f32.mrb[0].mxu0
          %599 = vmatprep.mubr.f32.mxu0 0.0
          %600 = vmatmul.mubr.f32.gmra.mrb[0].mxu0 %v455
          %v601 = vpop.f32.mrb[0].mxu0
          %v602 = vadd.f32 0.0, %v601
          %v603 = vpop.f32.mrb[0].mxu0
          %604 = vmatprep.mubr.f32.mxu0 0.0
          %605 = vmatmul.mubr.f32.gmra.mrb[0].mxu0 %v456
          %v606 = vpop.f32.mrb[0].mxu0
          %v607 = vadd.f32 0.0, %v606
          %v608 = vpop.f32.mrb[0].mxu0
          %609 = vmatprep.mubr.f32.mxu0 0.0
          %610 = vmatmul.mubr.f32.gmra.mrb[0].mxu0 %v457
          %v611 = vpop.f32.mrb[0].mxu0
          %v612 = vadd.f32 0.0, %v611
          %v613 = vpop.f32.mrb[0].mxu0
          %614 = vmatprep.mubr.f32.mxu0 0.0
          %615 = vmatmul.mubr.f32.gmra.mrb[0].mxu0 %v458
          %v616 = vpop.f32.mrb[0].mxu0
          %v617 = vadd.f32 0.0, %v616
          %v618 = vpop.f32.mrb[0].mxu0
          %619 = vmatprep.mubr.f32.mxu0 0.0
          %620 = vmatmul.mubr.f32.gmra.mrb[0].mxu0 %v459
          %v621 = vpop.f32.mrb[0].mxu0
          %v622 = vadd.f32 0.0, %v621
          %v623 = vpop.f32.mrb[0].mxu0
          %624 = vmatprep.mubr.f32.mxu0 0.0
          %625 = vmatmul.mubr.f32.gmra.mrb[0].mxu0 %v460
          %v626 = vpop.f32.mrb[0].mxu0
          %v627 = vadd.f32 0.0, %v626
          %v628 = vpop.f32.mrb[0].mxu0
          %629 = vmatprep.mubr.f32.mxu0 0.0
          %630 = vmatmul.mubr.f32.gmra.mrb[0].mxu0 %v461
          %v631 = vpop.f32.mrb[0].mxu0
          %v632 = vadd.f32 0.0, %v631
          %v633 = vpop.f32.mrb[0].mxu0
          %634 = vmatprep.mubr.f32.mxu0 0.0
          %635 = vmatmul.mubr.f32.gmra.mrb[0].mxu0 %v462
          %v636 = vpop.f32.mrb[0].mxu0
          %v637 = vadd.f32 0.0, %v636
          %v638 = vpop.f32.mrb[0].mxu0
          %639 = vmatprep.mubr.f32.mxu0 0.0
          %640 = vmatmul.mubr.f32.gmra.mrb[0].mxu0 %v463
          %v641 = vpop.f32.mrb[0].mxu0
          %v642 = vadd.f32 0.0, %v641
          %v643 = vpop.f32.mrb[0].mxu0
          %644 = vmatprep.mubr.f32.mxu0 0.0
          %645 = vmatmul.mubr.f32.gmra.mrb[0].mxu0 %v464
          %v646 = vpop.f32.mrb[0].mxu0
          %v647 = vadd.f32 0.0, %v646
          %v648 = vpop.f32.mrb[0].mxu0
          %649 = vmatprep.mubr.f32.mxu0 0.0
          %650 = vmatmul.mubr.f32.gmra.mrb[0].mxu0 %v465
          %v651 = vpop.f32.mrb[0].mxu0
          %v652 = vadd.f32 0.0, %v651
          %v653 = vpop.f32.mrb[0].mxu0
          %654 = vmatprep.mubr.f32.mxu0 0.0
          %655 = vmatmul.mubr.f32.gmra.mrb[0].mxu0 %v466
          %v656 = vpop.f32.mrb[0].mxu0
          %v657 = vadd.f32 0.0, %v656
          %v658 = vpop.f32.mrb[0].mxu0
          %659 = vmatprep.mubr.f32.mxu0 0.0
          %660 = vmatmul.mubr.f32.gmra.mrb[0].mxu0 %v467
          %v661 = vpop.f32.mrb[0].mxu0
          %v662 = vadd.f32 0.0, %v661
          %v663 = vpop.f32.mrb[0].mxu0
          %664 = vmatprep.mubr.f32.mxu0 0.0
          %665 = vmatmul.mubr.f32.gmra.mrb[0].mxu0 %v468
          %v666 = vpop.f32.mrb[0].mxu0
          %v667 = vadd.f32 0.0, %v666
          %v668 = vpop.f32.mrb[0].mxu0
          %669 = vmatprep.mubr.f32.mxu0 0.0
          %670 = vmatmul.mubr.f32.gmra.mrb[0].mxu0 %v469
          %v671 = vpop.f32.mrb[0].mxu0
          %v672 = vadd.f32 0.0, %v671
          %v673 = vpop.f32.mrb[0].mxu0
          %674 = vdwg.mxu0
          %v675 = vld [vmem:[#allocation9] sm:$0xff]
          %v676 = vld [vmem:[#allocation9 + $0x8] sm:$0xff]
          %vm677 = vcmask 64512
          %v679 = vsel %vm677, %v597, 0
          %v682 = vsel %vm677, %v602, 0
          %v685 = vsel %vm677, %v607, 0
          %v688 = vsel %vm677, %v612, 0
          %v691 = vsel %vm677, %v617, 0
          %v694 = vsel %vm677, %v622, 0
          %v697 = vsel %vm677, %v627, 0
          %v700 = vsel %vm677, %v632, 0
          %702 = vmatprep.subr.mxu0 0.0
          %703 = vmatpush1.msra.mxu0 %v676
          %704 = vmatprep.subr.mxu0 0.0
          %705 = vmatpush1.msra.mxu0 0.0
          %706 = vmatprep.subr.mxu0 0.0
          %707 = vmatpush1.msra.mxu0 0.0
          %708 = vmatprep.subr.mxu0 0.0
          %709 = vmatpush1.msra.mxu0 0.0
          %710 = vmatprep.subr.mxu0 0.0
          %711 = vmatpush1.msra.mxu0 0.0
          %712 = vmatprep.subr.mxu0 0.0
          %713 = vmatpush1.msra.mxu0 0.0
          %714 = vmatprep.subr.mxu0 0.0
          %715 = vmatpush1.msra.mxu0 0.0
          %716 = vmatprep.subr.mxu0 0.0
          %717 = vmatpush1.msra.mxu0 0.0
          %718 = vmatprep.subr.mxu0 0.0
          %719 = vmatpush1.msra.mxu0 0.0
          %720 = vmatprep.subr.mxu0 0.0
          %721 = vmatpush1.msra.mxu0 0.0
          %722 = vmatprep.subr.mxu0 0.0
          %723 = vmatpush1.msra.mxu0 0.0
          %724 = vmatprep.subr.mxu0 0.0
          %725 = vmatpush1.msra.mxu0 0.0
          %726 = vmatprep.subr.mxu0 0.0
          %727 = vmatpush1.msra.mxu0 0.0
          %728 = vmatprep.subr.mxu0 0.0
          %729 = vmatpush1.msra.mxu0 0.0
          %730 = vmatprep.subr.mxu0 0.0
          %731 = vmatpush1.msra.mxu0 0.0
          %732 = vmatprep.subr.mxu0 0.0
          %733 = vmatpush1.msra.mxu0 0.0
          %734 = vmatprep.subr.mxu0 0.0
          %735 = vmatpush1.msra.mxu0 0.0
          %736 = vmatprep.subr.mxu0 0.0
          %737 = vmatpush1.msra.mxu0 0.0
          %738 = vmatprep.subr.mxu0 0.0
          %739 = vmatpush1.msra.mxu0 0.0
          %740 = vmatprep.subr.mxu0 0.0
          %741 = vmatpush1.msra.mxu0 0.0
          %742 = vmatprep.subr.mxu0 0.0
          %743 = vmatpush1.msra.mxu0 0.0
          %744 = vmatprep.subr.mxu0 0.0
          %745 = vmatpush1.msra.mxu0 0.0
          %746 = vmatprep.subr.mxu0 0.0
          %747 = vmatpush1.msra.mxu0 0.0
          %748 = vmatprep.subr.mxu0 0.0
          %749 = vmatpush1.msra.mxu0 0.0
          %750 = vmatprep.subr.mxu0 0.0
          %751 = vmatpush1.msra.mxu0 0.0
          %752 = vmatprep.subr.mxu0 0.0
          %753 = vmatpush1.msra.mxu0 0.0
          %754 = vmatprep.subr.mxu0 0.0
          %755 = vmatpush1.msra.mxu0 0.0
          %756 = vmatprep.subr.mxu0 0.0
          %757 = vmatpush1.msra.mxu0 0.0
          %758 = vmatprep.subr.mxu0 0.0
          %759 = vmatpush1.msra.mxu0 0.0
          %760 = vmatprep.subr.mxu0 0.0
          %761 = vmatpush1.msra.mxu0 0.0
          %762 = vmatprep.subr.mxu0 0.0
          %763 = vmatpush1.msra.mxu0 0.0
          %764 = vmatprep.subr.mxu0 0.0
          %765 = vmatpush1.msra.mxu0 0.0
          %766 = vmatprep.mubr.f32.mxu0 0.0
          %767 = vmatmul.mubr.f32.gmra.mrb[0].mxu0 %v679
          %v768 = vpop.f32.mrb[0].mxu0
          %v769 = vadd.f32 0.0, %v768
          %v770 = vpop.f32.mrb[0].mxu0
          %771 = vmatprep.mubr.f32.mxu0 0.0
          %772 = vmatmul.mubr.f32.gmra.mrb[0].mxu0 %v682
          %v773 = vpop.f32.mrb[0].mxu0
          %v774 = vadd.f32 0.0, %v773
          %v775 = vpop.f32.mrb[0].mxu0
          %776 = vmatprep.mubr.f32.mxu0 0.0
          %777 = vmatmul.mubr.f32.gmra.mrb[0].mxu0 %v685
          %v778 = vpop.f32.mrb[0].mxu0
          %v779 = vadd.f32 0.0, %v778
          %v780 = vpop.f32.mrb[0].mxu0
          %781 = vmatprep.mubr.f32.mxu0 0.0
          %782 = vmatmul.mubr.f32.gmra.mrb[0].mxu0 %v688
          %v783 = vpop.f32.mrb[0].mxu0
          %v784 = vadd.f32 0.0, %v783
          %v785 = vpop.f32.mrb[0].mxu0
          %786 = vmatprep.mubr.f32.mxu0 0.0
          %787 = vmatmul.mubr.f32.gmra.mrb[0].mxu0 %v691
          %v788 = vpop.f32.mrb[0].mxu0
          %v789 = vadd.f32 0.0, %v788
          %v790 = vpop.f32.mrb[0].mxu0
          %791 = vmatprep.mubr.f32.mxu0 0.0
          %792 = vmatmul.mubr.f32.gmra.mrb[0].mxu0 %v694
          %v793 = vpop.f32.mrb[0].mxu0
          %v794 = vadd.f32 0.0, %v793
          %v795 = vpop.f32.mrb[0].mxu0
          %796 = vmatprep.mubr.f32.mxu0 0.0
          %797 = vmatmul.mubr.f32.gmra.mrb[0].mxu0 %v697
          %v798 = vpop.f32.mrb[0].mxu0
          %v799 = vadd.f32 0.0, %v798
          %v800 = vpop.f32.mrb[0].mxu0
          %801 = vmatprep.mubr.f32.mxu0 0.0
          %802 = vmatmul.mubr.f32.gmra.mrb[0].mxu0 %v700
          %v803 = vpop.f32.mrb[0].mxu0
          %v804 = vadd.f32 0.0, %v803
          %v805 = vpop.f32.mrb[0].mxu0
          %806 = vdwg.mxu0
          %v808 = vsel %vm677, %v557, 0
          %v811 = vsel %vm677, %v562, 0
          %v814 = vsel %vm677, %v567, 0
          %v817 = vsel %vm677, %v572, 0
          %v820 = vsel %vm677, %v577, 0
          %v823 = vsel %vm677, %v582, 0
          %v826 = vsel %vm677, %v587, 0
          %v829 = vsel %vm677, %v592, 0
          %831 = vmatprep.subr.mxu0 0.0
          %832 = vmatpush1.msra.mxu0 %v675
          %833 = vmatprep.subr.mxu0 0.0
          %834 = vmatpush1.msra.mxu0 0.0
          %835 = vmatprep.subr.mxu0 0.0
          %836 = vmatpush1.msra.mxu0 0.0
          %837 = vmatprep.subr.mxu0 0.0
          %838 = vmatpush1.msra.mxu0 0.0
          %839 = vmatprep.subr.mxu0 0.0
          %840 = vmatpush1.msra.mxu0 0.0
          %841 = vmatprep.subr.mxu0 0.0
          %842 = vmatpush1.msra.mxu0 0.0
          %843 = vmatprep.subr.mxu0 0.0
          %844 = vmatpush1.msra.mxu0 0.0
          %845 = vmatprep.subr.mxu0 0.0
          %846 = vmatpush1.msra.mxu0 0.0
          %847 = vmatprep.subr.mxu0 0.0
          %848 = vmatpush1.msra.mxu0 0.0
          %849 = vmatprep.subr.mxu0 0.0
          %850 = vmatpush1.msra.mxu0 0.0
          %851 = vmatprep.subr.mxu0 0.0
          %852 = vmatpush1.msra.mxu0 0.0
          %853 = vmatprep.subr.mxu0 0.0
          %854 = vmatpush1.msra.mxu0 0.0
          %855 = vmatprep.subr.mxu0 0.0
          %856 = vmatpush1.msra.mxu0 0.0
          %857 = vmatprep.subr.mxu0 0.0
          %858 = vmatpush1.msra.mxu0 0.0
          %859 = vmatprep.subr.mxu0 0.0
          %860 = vmatpush1.msra.mxu0 0.0
          %861 = vmatprep.subr.mxu0 0.0
          %862 = vmatpush1.msra.mxu0 0.0
          %863 = vmatprep.subr.mxu0 0.0
          %864 = vmatpush1.msra.mxu0 0.0
          %865 = vmatprep.subr.mxu0 0.0
          %866 = vmatpush1.msra.mxu0 0.0
          %867 = vmatprep.subr.mxu0 0.0
          %868 = vmatpush1.msra.mxu0 0.0
          %869 = vmatprep.subr.mxu0 0.0
          %870 = vmatpush1.msra.mxu0 0.0
          %871 = vmatprep.subr.mxu0 0.0
          %872 = vmatpush1.msra.mxu0 0.0
          %873 = vmatprep.subr.mxu0 0.0
          %874 = vmatpush1.msra.mxu0 0.0
          %875 = vmatprep.subr.mxu0 0.0
          %876 = vmatpush1.msra.mxu0 0.0
          %877 = vmatprep.subr.mxu0 0.0
          %878 = vmatpush1.msra.mxu0 0.0
          %879 = vmatprep.subr.mxu0 0.0
          %880 = vmatpush1.msra.mxu0 0.0
          %881 = vmatprep.subr.mxu0 0.0
          %882 = vmatpush1.msra.mxu0 0.0
          %883 = vmatprep.subr.mxu0 0.0
          %884 = vmatpush1.msra.mxu0 0.0
          %885 = vmatprep.subr.mxu0 0.0
          %886 = vmatpush1.msra.mxu0 0.0
          %887 = vmatprep.subr.mxu0 0.0
          %888 = vmatpush1.msra.mxu0 0.0
          %889 = vmatprep.subr.mxu0 0.0
          %890 = vmatpush1.msra.mxu0 0.0
          %891 = vmatprep.subr.mxu0 0.0
          %892 = vmatpush1.msra.mxu0 0.0
          %893 = vmatprep.subr.mxu0 0.0
          %894 = vmatpush1.msra.mxu0 0.0
          %895 = vmatprep.mubr.f32.mxu0 0.0
          %896 = vmatmul.mubr.f32.gmra.mrb[0].mxu0 %v808
          %v897 = vpop.f32.mrb[0].mxu0
          %v898 = vadd.f32 %v769, %v897
          %v899 = vpop.f32.mrb[0].mxu0
          %900 = vmatprep.mubr.f32.mxu0 0.0
          %901 = vmatmul.mubr.f32.gmra.mrb[0].mxu0 %v811
          %v902 = vpop.f32.mrb[0].mxu0
          %v903 = vadd.f32 %v774, %v902
          %v904 = vpop.f32.mrb[0].mxu0
          %905 = vmatprep.mubr.f32.mxu0 0.0
          %906 = vmatmul.mubr.f32.gmra.mrb[0].mxu0 %v814
          %v907 = vpop.f32.mrb[0].mxu0
          %v908 = vadd.f32 %v779, %v907
          %v909 = vpop.f32.mrb[0].mxu0
          %910 = vmatprep.mubr.f32.mxu0 0.0
          %911 = vmatmul.mubr.f32.gmra.mrb[0].mxu0 %v817
          %v912 = vpop.f32.mrb[0].mxu0
          %v913 = vadd.f32 %v784, %v912
          %v914 = vpop.f32.mrb[0].mxu0
          %915 = vmatprep.mubr.f32.mxu0 0.0
          %916 = vmatmul.mubr.f32.gmra.mrb[0].mxu0 %v820
          %v917 = vpop.f32.mrb[0].mxu0
          %v918 = vadd.f32 %v789, %v917
          %v919 = vpop.f32.mrb[0].mxu0
          %920 = vmatprep.mubr.f32.mxu0 0.0
          %921 = vmatmul.mubr.f32.gmra.mrb[0].mxu0 %v823
          %v922 = vpop.f32.mrb[0].mxu0
          %v923 = vadd.f32 %v794, %v922
          %v924 = vpop.f32.mrb[0].mxu0
          %925 = vmatprep.mubr.f32.mxu0 0.0
          %926 = vmatmul.mubr.f32.gmra.mrb[0].mxu0 %v826
          %v927 = vpop.f32.mrb[0].mxu0
          %v928 = vadd.f32 %v799, %v927
          %v929 = vpop.f32.mrb[0].mxu0
          %930 = vmatprep.mubr.f32.mxu0 0.0
          %931 = vmatmul.mubr.f32.gmra.mrb[0].mxu0 %v829
          %v932 = vpop.f32.mrb[0].mxu0
          %v933 = vadd.f32 %v804, %v932
          %v934 = vpop.f32.mrb[0].mxu0
          %935 = vdwg.mxu0
          %v936 = vld [vmem:[#allocation9 + $0x10] sm:$0xff]
          %v938 = vsel %vm677, %v637, 0
          %v941 = vsel %vm677, %v642, 0
          %v944 = vsel %vm677, %v647, 0
          %v947 = vsel %vm677, %v652, 0
          %v950 = vsel %vm677, %v657, 0
          %v953 = vsel %vm677, %v662, 0
          %v956 = vsel %vm677, %v667, 0
          %v959 = vsel %vm677, %v672, 0
          %961 = vmatprep.subr.mxu0 0.0
          %962 = vmatpush1.msra.mxu0 %v936
          %963 = vmatprep.subr.mxu0 0.0
          %964 = vmatpush1.msra.mxu0 0.0
          %965 = vmatprep.subr.mxu0 0.0
          %966 = vmatpush1.msra.mxu0 0.0
          %967 = vmatprep.subr.mxu0 0.0
          %968 = vmatpush1.msra.mxu0 0.0
          %969 = vmatprep.subr.mxu0 0.0
          %970 = vmatpush1.msra.mxu0 0.0
          %971 = vmatprep.subr.mxu0 0.0
          %972 = vmatpush1.msra.mxu0 0.0
          %973 = vmatprep.subr.mxu0 0.0
          %974 = vmatpush1.msra.mxu0 0.0
          %975 = vmatprep.subr.mxu0 0.0
          %976 = vmatpush1.msra.mxu0 0.0
          %977 = vmatprep.subr.mxu0 0.0
          %978 = vmatpush1.msra.mxu0 0.0
          %979 = vmatprep.subr.mxu0 0.0
          %980 = vmatpush1.msra.mxu0 0.0
          %981 = vmatprep.subr.mxu0 0.0
          %982 = vmatpush1.msra.mxu0 0.0
          %983 = vmatprep.subr.mxu0 0.0
          %984 = vmatpush1.msra.mxu0 0.0
          %985 = vmatprep.subr.mxu0 0.0
          %986 = vmatpush1.msra.mxu0 0.0
          %987 = vmatprep.subr.mxu0 0.0
          %988 = vmatpush1.msra.mxu0 0.0
          %989 = vmatprep.subr.mxu0 0.0
          %990 = vmatpush1.msra.mxu0 0.0
          %991 = vmatprep.subr.mxu0 0.0
          %992 = vmatpush1.msra.mxu0 0.0
          %993 = vmatprep.subr.mxu0 0.0
          %994 = vmatpush1.msra.mxu0 0.0
          %995 = vmatprep.subr.mxu0 0.0
          %996 = vmatpush1.msra.mxu0 0.0
          %997 = vmatprep.subr.mxu0 0.0
          %998 = vmatpush1.msra.mxu0 0.0
          %999 = vmatprep.subr.mxu0 0.0
          %1000 = vmatpush1.msra.mxu0 0.0
          %1001 = vmatprep.subr.mxu0 0.0
          %1002 = vmatpush1.msra.mxu0 0.0
          %1003 = vmatprep.subr.mxu0 0.0
          %1004 = vmatpush1.msra.mxu0 0.0
          %1005 = vmatprep.subr.mxu0 0.0
          %1006 = vmatpush1.msra.mxu0 0.0
          %1007 = vmatprep.subr.mxu0 0.0
          %1008 = vmatpush1.msra.mxu0 0.0
          %1009 = vmatprep.subr.mxu0 0.0
          %1010 = vmatpush1.msra.mxu0 0.0
          %1011 = vmatprep.subr.mxu0 0.0
          %1012 = vmatpush1.msra.mxu0 0.0
          %1013 = vmatprep.subr.mxu0 0.0
          %1014 = vmatpush1.msra.mxu0 0.0
          %1015 = vmatprep.subr.mxu0 0.0
          %1016 = vmatpush1.msra.mxu0 0.0
          %1017 = vmatprep.subr.mxu0 0.0
          %1018 = vmatpush1.msra.mxu0 0.0
          %1019 = vmatprep.subr.mxu0 0.0
          %1020 = vmatpush1.msra.mxu0 0.0
          %1021 = vmatprep.subr.mxu0 0.0
          %1022 = vmatpush1.msra.mxu0 0.0
          %1023 = vmatprep.subr.mxu0 0.0
          %1024 = vmatpush1.msra.mxu0 0.0
          %1025 = vmatprep.mubr.f32.mxu0 0.0
          %1026 = vmatmul.mubr.f32.gmra.mrb[0].mxu0 %v938
          %v1027 = vpop.f32.mrb[0].mxu0
          %v1028 = vadd.f32 0.0, %v1027
          %v1029 = vpop.f32.mrb[0].mxu0
          %1030 = vmatprep.mubr.f32.mxu0 0.0
          %1031 = vmatmul.mubr.f32.gmra.mrb[0].mxu0 %v941
          %v1032 = vpop.f32.mrb[0].mxu0
          %v1033 = vadd.f32 0.0, %v1032
          %v1034 = vpop.f32.mrb[0].mxu0
          %1035 = vmatprep.mubr.f32.mxu0 0.0
          %1036 = vmatmul.mubr.f32.gmra.mrb[0].mxu0 %v944
          %v1037 = vpop.f32.mrb[0].mxu0
          %v1038 = vadd.f32 0.0, %v1037
          %v1039 = vpop.f32.mrb[0].mxu0
          %1040 = vmatprep.mubr.f32.mxu0 0.0
          %1041 = vmatmul.mubr.f32.gmra.mrb[0].mxu0 %v947
          %v1042 = vpop.f32.mrb[0].mxu0
          %v1043 = vadd.f32 0.0, %v1042
          %v1044 = vpop.f32.mrb[0].mxu0
          %1045 = vmatprep.mubr.f32.mxu0 0.0
          %1046 = vmatmul.mubr.f32.gmra.mrb[0].mxu0 %v950
          %v1047 = vpop.f32.mrb[0].mxu0
          %v1048 = vadd.f32 0.0, %v1047
          %v1049 = vpop.f32.mrb[0].mxu0
          %1050 = vmatprep.mubr.f32.mxu0 0.0
          %1051 = vmatmul.mubr.f32.gmra.mrb[0].mxu0 %v953
          %v1052 = vpop.f32.mrb[0].mxu0
          %v1053 = vadd.f32 0.0, %v1052
          %v1054 = vpop.f32.mrb[0].mxu0
          %1055 = vmatprep.mubr.f32.mxu0 0.0
          %1056 = vmatmul.mubr.f32.gmra.mrb[0].mxu0 %v956
          %v1057 = vpop.f32.mrb[0].mxu0
          %v1058 = vadd.f32 0.0, %v1057
          %v1059 = vpop.f32.mrb[0].mxu0
          %1060 = vmatprep.mubr.f32.mxu0 0.0
          %1061 = vmatmul.mubr.f32.gmra.mrb[0].mxu0 %v959
          %v1062 = vpop.f32.mrb[0].mxu0
          %v1063 = vadd.f32 0.0, %v1062
          %v1064 = vpop.f32.mrb[0].mxu0
          %1065 = vdwg.mxu0
          %v1066 = vadd.f32 %v898, %v1028
          %v1067 = vadd.f32 %v903, %v1033
          %v1068 = vadd.f32 %v908, %v1038
          %v1069 = vadd.f32 %v913, %v1043
          %v1070 = vadd.f32 %v918, %v1048
          %v1071 = vadd.f32 %v923, %v1053
          %v1072 = vadd.f32 %v928, %v1058
          %v1073 = vadd.f32 %v933, %v1063
          %s1074 = scalar_lea.vmem [#allocation4], %s421
          %v1075 = vld [vmem:[%s1074] sm:$0xff]
          %v1076 = vld [vmem:[%s1074 + $0x8] sm:$0xff]
          %v1077 = vld [vmem:[%s1074 + $0x10] sm:$0xff]
          %v1078 = vld [vmem:[%s1074 + $0x18] sm:$0xff]
          %v1079 = vld [vmem:[%s1074 + $0x20] sm:$0xff]
          %v1080 = vld [vmem:[%s1074 + $0x28] sm:$0xff]
          %v1081 = vld [vmem:[%s1074 + $0x30] sm:$0xff]
          %v1082 = vld [vmem:[%s1074 + $0x38] sm:$0xff]
          %v1083 = vld [vmem:[#allocation9 + $0x18] sm:$0xff]
          %v1085 = vsel %vm677, %v1075, 0
          %v1088 = vsel %vm677, %v1076, 0
          %v1091 = vsel %vm677, %v1077, 0
          %v1094 = vsel %vm677, %v1078, 0
          %v1097 = vsel %vm677, %v1079, 0
          %v1100 = vsel %vm677, %v1080, 0
          %v1103 = vsel %vm677, %v1081, 0
          %v1106 = vsel %vm677, %v1082, 0
          %1108 = vmatprep.subr.mxu0 0.0
          %1109 = vmatpush1.msra.mxu0 %v1083
          %1110 = vmatprep.subr.mxu0 0.0
          %1111 = vmatpush1.msra.mxu0 0.0
          %1112 = vmatprep.subr.mxu0 0.0
          %1113 = vmatpush1.msra.mxu0 0.0
          %1114 = vmatprep.subr.mxu0 0.0
          %1115 = vmatpush1.msra.mxu0 0.0
          %1116 = vmatprep.subr.mxu0 0.0
          %1117 = vmatpush1.msra.mxu0 0.0
          %1118 = vmatprep.subr.mxu0 0.0
          %1119 = vmatpush1.msra.mxu0 0.0
          %1120 = vmatprep.subr.mxu0 0.0
          %1121 = vmatpush1.msra.mxu0 0.0
          %1122 = vmatprep.subr.mxu0 0.0
          %1123 = vmatpush1.msra.mxu0 0.0
          %1124 = vmatprep.subr.mxu0 0.0
          %1125 = vmatpush1.msra.mxu0 0.0
          %1126 = vmatprep.subr.mxu0 0.0
          %1127 = vmatpush1.msra.mxu0 0.0
          %1128 = vmatprep.subr.mxu0 0.0
          %1129 = vmatpush1.msra.mxu0 0.0
          %1130 = vmatprep.subr.mxu0 0.0
          %1131 = vmatpush1.msra.mxu0 0.0
          %1132 = vmatprep.subr.mxu0 0.0
          %1133 = vmatpush1.msra.mxu0 0.0
          %1134 = vmatprep.subr.mxu0 0.0
          %1135 = vmatpush1.msra.mxu0 0.0
          %1136 = vmatprep.subr.mxu0 0.0
          %1137 = vmatpush1.msra.mxu0 0.0
          %1138 = vmatprep.subr.mxu0 0.0
          %1139 = vmatpush1.msra.mxu0 0.0
          %1140 = vmatprep.subr.mxu0 0.0
          %1141 = vmatpush1.msra.mxu0 0.0
          %1142 = vmatprep.subr.mxu0 0.0
          %1143 = vmatpush1.msra.mxu0 0.0
          %1144 = vmatprep.subr.mxu0 0.0
          %1145 = vmatpush1.msra.mxu0 0.0
          %1146 = vmatprep.subr.mxu0 0.0
          %1147 = vmatpush1.msra.mxu0 0.0
          %1148 = vmatprep.subr.mxu0 0.0
          %1149 = vmatpush1.msra.mxu0 0.0
          %1150 = vmatprep.subr.mxu0 0.0
          %1151 = vmatpush1.msra.mxu0 0.0
          %1152 = vmatprep.subr.mxu0 0.0
          %1153 = vmatpush1.msra.mxu0 0.0
          %1154 = vmatprep.subr.mxu0 0.0
          %1155 = vmatpush1.msra.mxu0 0.0
          %1156 = vmatprep.subr.mxu0 0.0
          %1157 = vmatpush1.msra.mxu0 0.0
          %1158 = vmatprep.subr.mxu0 0.0
          %1159 = vmatpush1.msra.mxu0 0.0
          %1160 = vmatprep.subr.mxu0 0.0
          %1161 = vmatpush1.msra.mxu0 0.0
          %1162 = vmatprep.subr.mxu0 0.0
          %1163 = vmatpush1.msra.mxu0 0.0
          %1164 = vmatprep.subr.mxu0 0.0
          %1165 = vmatpush1.msra.mxu0 0.0
          %1166 = vmatprep.subr.mxu0 0.0
          %1167 = vmatpush1.msra.mxu0 0.0
          %1168 = vmatprep.subr.mxu0 0.0
          %1169 = vmatpush1.msra.mxu0 0.0
          %1170 = vmatprep.subr.mxu0 0.0
          %1171 = vmatpush1.msra.mxu0 0.0
          %1172 = vmatprep.mubr.f32.mxu0 0.0
          %1173 = vmatmul.mubr.f32.gmra.mrb[0].mxu0 %v1085
          %v1174 = vpop.f32.mrb[0].mxu0
          %v1175 = vadd.f32 0.0, %v1174
          %v1176 = vpop.f32.mrb[0].mxu0
          %1177 = vmatprep.mubr.f32.mxu0 0.0
          %1178 = vmatmul.mubr.f32.gmra.mrb[0].mxu0 %v1088
          %v1179 = vpop.f32.mrb[0].mxu0
          %v1180 = vadd.f32 0.0, %v1179
          %v1181 = vpop.f32.mrb[0].mxu0
          %1182 = vmatprep.mubr.f32.mxu0 0.0
          %1183 = vmatmul.mubr.f32.gmra.mrb[0].mxu0 %v1091
          %v1184 = vpop.f32.mrb[0].mxu0
          %v1185 = vadd.f32 0.0, %v1184
          %v1186 = vpop.f32.mrb[0].mxu0
          %1187 = vmatprep.mubr.f32.mxu0 0.0
          %1188 = vmatmul.mubr.f32.gmra.mrb[0].mxu0 %v1094
          %v1189 = vpop.f32.mrb[0].mxu0
          %v1190 = vadd.f32 0.0, %v1189
          %v1191 = vpop.f32.mrb[0].mxu0
          %1192 = vmatprep.mubr.f32.mxu0 0.0
          %1193 = vmatmul.mubr.f32.gmra.mrb[0].mxu0 %v1097
          %v1194 = vpop.f32.mrb[0].mxu0
          %v1195 = vadd.f32 0.0, %v1194
          %v1196 = vpop.f32.mrb[0].mxu0
          %1197 = vmatprep.mubr.f32.mxu0 0.0
          %1198 = vmatmul.mubr.f32.gmra.mrb[0].mxu0 %v1100
          %v1199 = vpop.f32.mrb[0].mxu0
          %v1200 = vadd.f32 0.0, %v1199
          %v1201 = vpop.f32.mrb[0].mxu0
          %1202 = vmatprep.mubr.f32.mxu0 0.0
          %1203 = vmatmul.mubr.f32.gmra.mrb[0].mxu0 %v1103
          %v1204 = vpop.f32.mrb[0].mxu0
          %v1205 = vadd.f32 0.0, %v1204
          %v1206 = vpop.f32.mrb[0].mxu0
          %1207 = vmatprep.mubr.f32.mxu0 0.0
          %1208 = vmatmul.mubr.f32.gmra.mrb[0].mxu0 %v1106
          %v1209 = vpop.f32.mrb[0].mxu0
          %v1210 = vadd.f32 0.0, %v1209
          %v1211 = vpop.f32.mrb[0].mxu0
          %1212 = vdwg.mxu0
          %v1213 = vadd.f32 %v1066, %v1175
          %v1214 = vadd.f32 %v1067, %v1180
          %v1215 = vadd.f32 %v1068, %v1185
          %v1216 = vadd.f32 %v1069, %v1190
          %v1217 = vadd.f32 %v1070, %v1195
          %v1218 = vadd.f32 %v1071, %v1200
          %v1219 = vadd.f32 %v1072, %v1205
          %v1220 = vadd.f32 %v1073, %v1210
          %v1221 = vld [vmem:[#allocation10] sm:$0x1]
          %v1223 = vlaneseq
          %v1224 = vshrl.u32 %v1223, 7
          %v1225 = vsub.s32 0, %v1224
          %v1226 = vrot.slane %v1221, %v1225
          %v1228 = vadd.f32 %v1213, %v1226
          %v1229 = vadd.f32 %v1214, %v1226
          %v1230 = vadd.f32 %v1215, %v1226
          %v1231 = vadd.f32 %v1216, %v1226
          %v1232 = vadd.f32 %v1217, %v1226
          %v1233 = vadd.f32 %v1218, %v1226
          %v1234 = vadd.f32 %v1219, %v1226
          %v1235 = vadd.f32 %v1220, %v1226
          %v1236 = vmax.f32 %v1228, 0.0
          %v1237 = vmax.f32 %v1229, 0.0
          %v1238 = vmax.f32 %v1230, 0.0
          %v1239 = vmax.f32 %v1231, 0.0
          %v1240 = vmax.f32 %v1232, 0.0
          %v1241 = vmax.f32 %v1233, 0.0
          %v1242 = vmax.f32 %v1234, 0.0
          %v1243 = vmax.f32 %v1235, 0.0
          %s1244 = scalar_lea.vmem [#allocation2], %s421
          %vm1245 = vcmask 130048
          %1246 = vst.msk [vmem:[%s1244] sm:$0xff] %vm1245, %v1236
          %1247 = vst.msk [vmem:[%s1244 + $0x8] sm:$0xff] %vm1245, %v1237
          %1248 = vst.msk [vmem:[%s1244 + $0x10] sm:$0xff] %vm1245, %v1238
          %1249 = vst.msk [vmem:[%s1244 + $0x18] sm:$0xff] %vm1245, %v1239
          %1250 = vst.msk [vmem:[%s1244 + $0x20] sm:$0xff] %vm1245, %v1240
          %1251 = vst.msk [vmem:[%s1244 + $0x28] sm:$0xff] %vm1245, %v1241
          %1252 = vst.msk [vmem:[%s1244 + $0x30] sm:$0xff] %vm1245, %v1242
          %1253 = vst.msk [vmem:[%s1244 + $0x38] sm:$0xff] %vm1245, %v1243
        $region88: #{tpu_custom_call.1} parent=51 // pred_fallthru
          _
        %p1254 = scmp.eq.s32.totalorder %s31, 1
        // Predicated region
        $region89: #{tpu_custom_call.1} parent=51 // pred_check
          %p1255 = pneg %p1254
        $region90: #{tpu_custom_call.1} parent=51 // pred_check_branch
          %1257 = sbr.rel (%p1255) target = $region92
        $region91: #{tpu_custom_call.1} parent=51 // pred_region
          %p1258 = scmp.eq.s32.totalorder %s32, 0
          // Predicated region
          $region93: #{tpu_custom_call.1} parent=91 // pred_check
            %p1259 = pneg %p1258
          $region94: #{tpu_custom_call.1} parent=91 // pred_check_branch
            %1261 = sbr.rel (%p1259) target = $region96
          $region95: #{tpu_custom_call.1} parent=91 // pred_region
            %vm1262 = vcmask 122880
            %1263 = vst.msk [vmem:[#allocation3] sm:$0x1] %vm1262, 0.0
          $region96: #{tpu_custom_call.1} parent=91 // pred_fallthru
            _
          %v1264 = vld [vmem:[#allocation2] sm:$0xff]
          %v1265 = vld [vmem:[#allocation2 + $0x8] sm:$0xff]
          %v1266 = vld [vmem:[#allocation2 + $0x10] sm:$0xff]
          %v1267 = vld [vmem:[#allocation2 + $0x18] sm:$0xff]
          %v1268 = vld [vmem:[#allocation2 + $0x20] sm:$0xff]
          %v1269 = vld [vmem:[#allocation2 + $0x28] sm:$0xff]
          %v1270 = vld [vmem:[#allocation2 + $0x30] sm:$0xff]
          %v1271 = vld [vmem:[#allocation2 + $0x38] sm:$0xff]
          %v1272 = vld [vmem:[#allocation2 + $0x40] sm:$0xff]
          %v1273 = vld [vmem:[#allocation2 + $0x48] sm:$0xff]
          %v1274 = vld [vmem:[#allocation2 + $0x50] sm:$0xff]
          %v1275 = vld [vmem:[#allocation2 + $0x58] sm:$0xff]
          %v1276 = vld [vmem:[#allocation2 + $0x60] sm:$0xff]
          %v1277 = vld [vmem:[#allocation2 + $0x68] sm:$0xff]
          %v1278 = vld [vmem:[#allocation2 + $0x70] sm:$0xff]
          %v1279 = vld [vmem:[#allocation2 + $0x78] sm:$0xff]
          %1280 = vmatprep.subr.mxu0 0.0
          %1281 = vmatpush1.msra.mxu0 %v1264
          %1282 = vmatprep.subr.mxu0 0.0
          %1283 = vmatpush1.msra.mxu0 %v1265
          %1284 = vmatprep.subr.mxu0 0.0
          %1285 = vmatpush1.msra.mxu0 %v1266
          %1286 = vmatprep.subr.mxu0 0.0
          %1287 = vmatpush1.msra.mxu0 %v1267
          %1288 = vmatprep.subr.mxu0 0.0
          %1289 = vmatpush1.msra.mxu0 %v1268
          %1290 = vmatprep.subr.mxu0 0.0
          %1291 = vmatpush1.msra.mxu0 %v1269
          %1292 = vmatprep.subr.mxu0 0.0
          %1293 = vmatpush1.msra.mxu0 %v1270
          %1294 = vmatprep.subr.mxu0 0.0
          %1295 = vmatpush1.msra.mxu0 %v1271
          %1296 = vmatprep.subr.mxu0 0.0
          %1297 = vmatpush1.msra.mxu0 %v1272
          %1298 = vmatprep.subr.mxu0 0.0
          %1299 = vmatpush1.msra.mxu0 %v1273
          %1300 = vmatprep.subr.mxu0 0.0
          %1301 = vmatpush1.msra.mxu0 %v1274
          %1302 = vmatprep.subr.mxu0 0.0
          %1303 = vmatpush1.msra.mxu0 %v1275
          %1304 = vmatprep.subr.mxu0 0.0
          %1305 = vmatpush1.msra.mxu0 %v1276
          %1306 = vmatprep.subr.mxu0 0.0
          %1307 = vmatpush1.msra.mxu0 %v1277
          %1308 = vmatprep.subr.mxu0 0.0
          %1309 = vmatpush1.msra.mxu0 %v1278
          %1310 = vmatprep.subr.mxu0 0.0
          %1311 = vmatpush1.msra.mxu0 %v1279
          %1312 = vmatprep.subr.mxu0 0.0
          %1313 = vmatpush1.msra.mxu0 0.0
          %1314 = vmatprep.subr.mxu0 0.0
          %1315 = vmatpush1.msra.mxu0 0.0
          %1316 = vmatprep.subr.mxu0 0.0
          %1317 = vmatpush1.msra.mxu0 0.0
          %1318 = vmatprep.subr.mxu0 0.0
          %1319 = vmatpush1.msra.mxu0 0.0
          %1320 = vmatprep.subr.mxu0 0.0
          %1321 = vmatpush1.msra.mxu0 0.0
          %1322 = vmatprep.subr.mxu0 0.0
          %1323 = vmatpush1.msra.mxu0 0.0
          %1324 = vmatprep.subr.mxu0 0.0
          %1325 = vmatpush1.msra.mxu0 0.0
          %1326 = vmatprep.subr.mxu0 0.0
          %1327 = vmatpush1.msra.mxu0 0.0
          %1328 = vmatprep.subr.mxu0 0.0
          %1329 = vmatpush1.msra.mxu0 0.0
          %1330 = vmatprep.subr.mxu0 0.0
          %1331 = vmatpush1.msra.mxu0 0.0
          %1332 = vmatprep.subr.mxu0 0.0
          %1333 = vmatpush1.msra.mxu0 0.0
          %1334 = vmatprep.subr.mxu0 0.0
          %1335 = vmatpush1.msra.mxu0 0.0
          %1336 = vmatprep.subr.mxu0 0.0
          %1337 = vmatpush1.msra.mxu0 0.0
          %1338 = vmatprep.subr.mxu0 0.0
          %1339 = vmatpush1.msra.mxu0 0.0
          %1340 = vmatprep.subr.mxu0 0.0
          %1341 = vmatpush1.msra.mxu0 0.0
          %1342 = vmatprep.subr.mxu0 0.0
          %1343 = vmatpush1.msra.mxu0 0.0
          %1344 = vmatprep.mubr.f32.mxu0 0.0
          %1345 = vmatmul.mubr.f32.gmra.mrb[0].mxu0 %v446
          %v1346 = vpop.f32.mrb[0].mxu0
          %v1347 = vadd.f32 0.0, %v1346
          %v1348 = vpop.f32.mrb[0].mxu0
          %1349 = vmatprep.mubr.f32.mxu0 0.0
          %1350 = vmatmul.mubr.f32.gmra.mrb[0].mxu0 %v447
          %v1351 = vpop.f32.mrb[0].mxu0
          %v1352 = vadd.f32 0.0, %v1351
          %v1353 = vpop.f32.mrb[0].mxu0
          %1354 = vmatprep.mubr.f32.mxu0 0.0
          %1355 = vmatmul.mubr.f32.gmra.mrb[0].mxu0 %v448
          %v1356 = vpop.f32.mrb[0].mxu0
          %v1357 = vadd.f32 0.0, %v1356
          %v1358 = vpop.f32.mrb[0].mxu0
          %1359 = vmatprep.mubr.f32.mxu0 0.0
          %1360 = vmatmul.mubr.f32.gmra.mrb[0].mxu0 %v449
          %v1361 = vpop.f32.mrb[0].mxu0
          %v1362 = vadd.f32 0.0, %v1361
          %v1363 = vpop.f32.mrb[0].mxu0
          %1364 = vmatprep.mubr.f32.mxu0 0.0
          %1365 = vmatmul.mubr.f32.gmra.mrb[0].mxu0 %v450
          %v1366 = vpop.f32.mrb[0].mxu0
          %v1367 = vadd.f32 0.0, %v1366
          %v1368 = vpop.f32.mrb[0].mxu0
          %1369 = vmatprep.mubr.f32.mxu0 0.0
          %1370 = vmatmul.mubr.f32.gmra.mrb[0].mxu0 %v451
          %v1371 = vpop.f32.mrb[0].mxu0
          %v1372 = vadd.f32 0.0, %v1371
          %v1373 = vpop.f32.mrb[0].mxu0
          %1374 = vmatprep.mubr.f32.mxu0 0.0
          %1375 = vmatmul.mubr.f32.gmra.mrb[0].mxu0 %v452
          %v1376 = vpop.f32.mrb[0].mxu0
          %v1377 = vadd.f32 0.0, %v1376
          %v1378 = vpop.f32.mrb[0].mxu0
          %1379 = vmatprep.mubr.f32.mxu0 0.0
          %1380 = vmatmul.mubr.f32.gmra.mrb[0].mxu0 %v453
          %v1381 = vpop.f32.mrb[0].mxu0
          %v1382 = vadd.f32 0.0, %v1381
          %v1383 = vpop.f32.mrb[0].mxu0
          %1384 = vmatprep.mubr.f32.mxu0 0.0
          %1385 = vmatmul.mubr.f32.gmra.mrb[0].mxu0 %v454
          %v1386 = vpop.f32.mrb[0].mxu0
          %v1387 = vadd.f32 0.0, %v1386
          %v1388 = vpop.f32.mrb[0].mxu0
          %1389 = vmatprep.mubr.f32.mxu0 0.0
          %1390 = vmatmul.mubr.f32.gmra.mrb[0].mxu0 %v455
          %v1391 = vpop.f32.mrb[0].mxu0
          %v1392 = vadd.f32 0.0, %v1391
          %v1393 = vpop.f32.mrb[0].mxu0
          %1394 = vmatprep.mubr.f32.mxu0 0.0
          %1395 = vmatmul.mubr.f32.gmra.mrb[0].mxu0 %v456
          %v1396 = vpop.f32.mrb[0].mxu0
          %v1397 = vadd.f32 0.0, %v1396
          %v1398 = vpop.f32.mrb[0].mxu0
          %1399 = vmatprep.mubr.f32.mxu0 0.0
          %1400 = vmatmul.mubr.f32.gmra.mrb[0].mxu0 %v457
          %v1401 = vpop.f32.mrb[0].mxu0
          %v1402 = vadd.f32 0.0, %v1401
          %v1403 = vpop.f32.mrb[0].mxu0
          %1404 = vmatprep.mubr.f32.mxu0 0.0
          %1405 = vmatmul.mubr.f32.gmra.mrb[0].mxu0 %v458
          %v1406 = vpop.f32.mrb[0].mxu0
          %v1407 = vadd.f32 0.0, %v1406
          %v1408 = vpop.f32.mrb[0].mxu0
          %1409 = vmatprep.mubr.f32.mxu0 0.0
          %1410 = vmatmul.mubr.f32.gmra.mrb[0].mxu0 %v459
          %v1411 = vpop.f32.mrb[0].mxu0
          %v1412 = vadd.f32 0.0, %v1411
          %v1413 = vpop.f32.mrb[0].mxu0
          %1414 = vmatprep.mubr.f32.mxu0 0.0
          %1415 = vmatmul.mubr.f32.gmra.mrb[0].mxu0 %v460
          %v1416 = vpop.f32.mrb[0].mxu0
          %v1417 = vadd.f32 0.0, %v1416
          %v1418 = vpop.f32.mrb[0].mxu0
          %1419 = vmatprep.mubr.f32.mxu0 0.0
          %1420 = vmatmul.mubr.f32.gmra.mrb[0].mxu0 %v461
          %v1421 = vpop.f32.mrb[0].mxu0
          %v1422 = vadd.f32 0.0, %v1421
          %v1423 = vpop.f32.mrb[0].mxu0
          %1424 = vmatprep.mubr.f32.mxu0 0.0
          %1425 = vmatmul.mubr.f32.gmra.mrb[0].mxu0 %v462
          %v1426 = vpop.f32.mrb[0].mxu0
          %v1427 = vadd.f32 0.0, %v1426
          %v1428 = vpop.f32.mrb[0].mxu0
          %1429 = vmatprep.mubr.f32.mxu0 0.0
          %1430 = vmatmul.mubr.f32.gmra.mrb[0].mxu0 %v463
          %v1431 = vpop.f32.mrb[0].mxu0
          %v1432 = vadd.f32 0.0, %v1431
          %v1433 = vpop.f32.mrb[0].mxu0
          %1434 = vmatprep.mubr.f32.mxu0 0.0
          %1435 = vmatmul.mubr.f32.gmra.mrb[0].mxu0 %v464
          %v1436 = vpop.f32.mrb[0].mxu0
          %v1437 = vadd.f32 0.0, %v1436
          %v1438 = vpop.f32.mrb[0].mxu0
          %1439 = vmatprep.mubr.f32.mxu0 0.0
          %1440 = vmatmul.mubr.f32.gmra.mrb[0].mxu0 %v465
          %v1441 = vpop.f32.mrb[0].mxu0
          %v1442 = vadd.f32 0.0, %v1441
          %v1443 = vpop.f32.mrb[0].mxu0
          %1444 = vmatprep.mubr.f32.mxu0 0.0
          %1445 = vmatmul.mubr.f32.gmra.mrb[0].mxu0 %v466
          %v1446 = vpop.f32.mrb[0].mxu0
          %v1447 = vadd.f32 0.0, %v1446
          %v1448 = vpop.f32.mrb[0].mxu0
          %1449 = vmatprep.mubr.f32.mxu0 0.0
          %1450 = vmatmul.mubr.f32.gmra.mrb[0].mxu0 %v467
          %v1451 = vpop.f32.mrb[0].mxu0
          %v1452 = vadd.f32 0.0, %v1451
          %v1453 = vpop.f32.mrb[0].mxu0
          %1454 = vmatprep.mubr.f32.mxu0 0.0
          %1455 = vmatmul.mubr.f32.gmra.mrb[0].mxu0 %v468
          %v1456 = vpop.f32.mrb[0].mxu0
          %v1457 = vadd.f32 0.0, %v1456
          %v1458 = vpop.f32.mrb[0].mxu0
          %1459 = vmatprep.mubr.f32.mxu0 0.0
          %1460 = vmatmul.mubr.f32.gmra.mrb[0].mxu0 %v469
          %v1461 = vpop.f32.mrb[0].mxu0
          %v1462 = vadd.f32 0.0, %v1461
          %v1463 = vpop.f32.mrb[0].mxu0
          %1464 = vdwg.mxu0
          %v1465 = vld [vmem:[#allocation12] sm:$0xff]
          %v1466 = vld [vmem:[#allocation12 + $0x8] sm:$0xff]
          %v1467 = vld [vmem:[#allocation12 + $0x10] sm:$0xff]
          %v1468 = vld [vmem:[#allocation12 + $0x18] sm:$0xff]
          %vm1469 = vcmask 130048
          %v1471 = vsel %vm1469, %v1387, 0
          %v1474 = vsel %vm1469, %v1392, 0
          %v1477 = vsel %vm1469, %v1397, 0
          %v1480 = vsel %vm1469, %v1402, 0
          %v1483 = vsel %vm1469, %v1407, 0
          %v1486 = vsel %vm1469, %v1412, 0
          %v1489 = vsel %vm1469, %v1417, 0
          %v1492 = vsel %vm1469, %v1422, 0
          %1494 = vmatprep.subr.mxu0 0.0
          %1495 = vmatpush1.msra.mxu0 %v1467
          %1496 = vmatprep.subr.mxu0 0.0
          %1497 = vmatpush1.msra.mxu0 %v1468
          %1498 = vmatprep.subr.mxu0 0.0
          %1499 = vmatpush1.msra.mxu0 0.0
          %1500 = vmatprep.subr.mxu0 0.0
          %1501 = vmatpush1.msra.mxu0 0.0
          %1502 = vmatprep.subr.mxu0 0.0
          %1503 = vmatpush1.msra.mxu0 0.0
          %1504 = vmatprep.subr.mxu0 0.0
          %1505 = vmatpush1.msra.mxu0 0.0
          %1506 = vmatprep.subr.mxu0 0.0
          %1507 = vmatpush1.msra.mxu0 0.0
          %1508 = vmatprep.subr.mxu0 0.0
          %1509 = vmatpush1.msra.mxu0 0.0
          %1510 = vmatprep.subr.mxu0 0.0
          %1511 = vmatpush1.msra.mxu0 0.0
          %1512 = vmatprep.subr.mxu0 0.0
          %1513 = vmatpush1.msra.mxu0 0.0
          %1514 = vmatprep.subr.mxu0 0.0
          %1515 = vmatpush1.msra.mxu0 0.0
          %1516 = vmatprep.subr.mxu0 0.0
          %1517 = vmatpush1.msra.mxu0 0.0
          %1518 = vmatprep.subr.mxu0 0.0
          %1519 = vmatpush1.msra.mxu0 0.0
          %1520 = vmatprep.subr.mxu0 0.0
          %1521 = vmatpush1.msra.mxu0 0.0
          %1522 = vmatprep.subr.mxu0 0.0
          %1523 = vmatpush1.msra.mxu0 0.0
          %1524 = vmatprep.subr.mxu0 0.0
          %1525 = vmatpush1.msra.mxu0 0.0
          %1526 = vmatprep.subr.mxu0 0.0
          %1527 = vmatpush1.msra.mxu0 0.0
          %1528 = vmatprep.subr.mxu0 0.0
          %1529 = vmatpush1.msra.mxu0 0.0
          %1530 = vmatprep.subr.mxu0 0.0
          %1531 = vmatpush1.msra.mxu0 0.0
          %1532 = vmatprep.subr.mxu0 0.0
          %1533 = vmatpush1.msra.mxu0 0.0
          %1534 = vmatprep.subr.mxu0 0.0
          %1535 = vmatpush1.msra.mxu0 0.0
          %1536 = vmatprep.subr.mxu0 0.0
          %1537 = vmatpush1.msra.mxu0 0.0
          %1538 = vmatprep.subr.mxu0 0.0
          %1539 = vmatpush1.msra.mxu0 0.0
          %1540 = vmatprep.subr.mxu0 0.0
          %1541 = vmatpush1.msra.mxu0 0.0
          %1542 = vmatprep.subr.mxu0 0.0
          %1543 = vmatpush1.msra.mxu0 0.0
          %1544 = vmatprep.subr.mxu0 0.0
          %1545 = vmatpush1.msra.mxu0 0.0
          %1546 = vmatprep.subr.mxu0 0.0
          %1547 = vmatpush1.msra.mxu0 0.0
          %1548 = vmatprep.subr.mxu0 0.0
          %1549 = vmatpush1.msra.mxu0 0.0
          %1550 = vmatprep.subr.mxu0 0.0
          %1551 = vmatpush1.msra.mxu0 0.0
          %1552 = vmatprep.subr.mxu0 0.0
          %1553 = vmatpush1.msra.mxu0 0.0
          %1554 = vmatprep.subr.mxu0 0.0
          %1555 = vmatpush1.msra.mxu0 0.0
          %1556 = vmatprep.subr.mxu0 0.0
          %1557 = vmatpush1.msra.mxu0 0.0
          %1558 = vmatprep.mubr.f32.mxu0 0.0
          %1559 = vmatmul.mubr.f32.gmra.mrb[0].mxu0 %v1471
          %v1560 = vpop.f32.mrb[0].mxu0
          %v1561 = vadd.f32 0.0, %v1560
          %v1562 = vpop.f32.mrb[0].mxu0
          %1563 = vmatprep.mubr.f32.mxu0 0.0
          %1564 = vmatmul.mubr.f32.gmra.mrb[0].mxu0 %v1474
          %v1565 = vpop.f32.mrb[0].mxu0
          %v1566 = vadd.f32 0.0, %v1565
          %v1567 = vpop.f32.mrb[0].mxu0
          %1568 = vmatprep.mubr.f32.mxu0 0.0
          %1569 = vmatmul.mubr.f32.gmra.mrb[0].mxu0 %v1477
          %v1570 = vpop.f32.mrb[0].mxu0
          %v1571 = vadd.f32 0.0, %v1570
          %v1572 = vpop.f32.mrb[0].mxu0
          %1573 = vmatprep.mubr.f32.mxu0 0.0
          %1574 = vmatmul.mubr.f32.gmra.mrb[0].mxu0 %v1480
          %v1575 = vpop.f32.mrb[0].mxu0
          %v1576 = vadd.f32 0.0, %v1575
          %v1577 = vpop.f32.mrb[0].mxu0
          %1578 = vmatprep.mubr.f32.mxu0 0.0
          %1579 = vmatmul.mubr.f32.gmra.mrb[0].mxu0 %v1483
          %v1580 = vpop.f32.mrb[0].mxu0
          %v1581 = vadd.f32 0.0, %v1580
          %v1582 = vpop.f32.mrb[0].mxu0
          %1583 = vmatprep.mubr.f32.mxu0 0.0
          %1584 = vmatmul.mubr.f32.gmra.mrb[0].mxu0 %v1486
          %v1585 = vpop.f32.mrb[0].mxu0
          %v1586 = vadd.f32 0.0, %v1585
          %v1587 = vpop.f32.mrb[0].mxu0
          %1588 = vmatprep.mubr.f32.mxu0 0.0
          %1589 = vmatmul.mubr.f32.gmra.mrb[0].mxu0 %v1489
          %v1590 = vpop.f32.mrb[0].mxu0
          %v1591 = vadd.f32 0.0, %v1590
          %v1592 = vpop.f32.mrb[0].mxu0
          %1593 = vmatprep.mubr.f32.mxu0 0.0
          %1594 = vmatmul.mubr.f32.gmra.mrb[0].mxu0 %v1492
          %v1595 = vpop.f32.mrb[0].mxu0
          %v1596 = vadd.f32 0.0, %v1595
          %v1597 = vpop.f32.mrb[0].mxu0
          %1598 = vdwg.mxu0
          %v1600 = vsel %vm1469, %v1347, 0
          %v1603 = vsel %vm1469, %v1352, 0
          %v1606 = vsel %vm1469, %v1357, 0
          %v1609 = vsel %vm1469, %v1362, 0
          %v1612 = vsel %vm1469, %v1367, 0
          %v1615 = vsel %vm1469, %v1372, 0
          %v1618 = vsel %vm1469, %v1377, 0
          %v1621 = vsel %vm1469, %v1382, 0
          %1623 = vmatprep.subr.mxu0 0.0
          %1624 = vmatpush1.msra.mxu0 %v1465
          %1625 = vmatprep.subr.mxu0 0.0
          %1626 = vmatpush1.msra.mxu0 %v1466
          %1627 = vmatprep.subr.mxu0 0.0
          %1628 = vmatpush1.msra.mxu0 0.0
          %1629 = vmatprep.subr.mxu0 0.0
          %1630 = vmatpush1.msra.mxu0 0.0
          %1631 = vmatprep.subr.mxu0 0.0
          %1632 = vmatpush1.msra.mxu0 0.0
          %1633 = vmatprep.subr.mxu0 0.0
          %1634 = vmatpush1.msra.mxu0 0.0
          %1635 = vmatprep.subr.mxu0 0.0
          %1636 = vmatpush1.msra.mxu0 0.0
          %1637 = vmatprep.subr.mxu0 0.0
          %1638 = vmatpush1.msra.mxu0 0.0
          %1639 = vmatprep.subr.mxu0 0.0
          %1640 = vmatpush1.msra.mxu0 0.0
          %1641 = vmatprep.subr.mxu0 0.0
          %1642 = vmatpush1.msra.mxu0 0.0
          %1643 = vmatprep.subr.mxu0 0.0
          %1644 = vmatpush1.msra.mxu0 0.0
          %1645 = vmatprep.subr.mxu0 0.0
          %1646 = vmatpush1.msra.mxu0 0.0
          %1647 = vmatprep.subr.mxu0 0.0
          %1648 = vmatpush1.msra.mxu0 0.0
          %1649 = vmatprep.subr.mxu0 0.0
          %1650 = vmatpush1.msra.mxu0 0.0
          %1651 = vmatprep.subr.mxu0 0.0
          %1652 = vmatpush1.msra.mxu0 0.0
          %1653 = vmatprep.subr.mxu0 0.0
          %1654 = vmatpush1.msra.mxu0 0.0
          %1655 = vmatprep.subr.mxu0 0.0
          %1656 = vmatpush1.msra.mxu0 0.0
          %1657 = vmatprep.subr.mxu0 0.0
          %1658 = vmatpush1.msra.mxu0 0.0
          %1659 = vmatprep.subr.mxu0 0.0
          %1660 = vmatpush1.msra.mxu0 0.0
          %1661 = vmatprep.subr.mxu0 0.0
          %1662 = vmatpush1.msra.mxu0 0.0
          %1663 = vmatprep.subr.mxu0 0.0
          %1664 = vmatpush1.msra.mxu0 0.0
          %1665 = vmatprep.subr.mxu0 0.0
          %1666 = vmatpush1.msra.mxu0 0.0
          %1667 = vmatprep.subr.mxu0 0.0
          %1668 = vmatpush1.msra.mxu0 0.0
          %1669 = vmatprep.subr.mxu0 0.0
          %1670 = vmatpush1.msra.mxu0 0.0
          %1671 = vmatprep.subr.mxu0 0.0
          %1672 = vmatpush1.msra.mxu0 0.0
          %1673 = vmatprep.subr.mxu0 0.0
          %1674 = vmatpush1.msra.mxu0 0.0
          %1675 = vmatprep.subr.mxu0 0.0
          %1676 = vmatpush1.msra.mxu0 0.0
          %1677 = vmatprep.subr.mxu0 0.0
          %1678 = vmatpush1.msra.mxu0 0.0
          %1679 = vmatprep.subr.mxu0 0.0
          %1680 = vmatpush1.msra.mxu0 0.0
          %1681 = vmatprep.subr.mxu0 0.0
          %1682 = vmatpush1.msra.mxu0 0.0
          %1683 = vmatprep.subr.mxu0 0.0
          %1684 = vmatpush1.msra.mxu0 0.0
          %1685 = vmatprep.subr.mxu0 0.0
          %1686 = vmatpush1.msra.mxu0 0.0
          %1687 = vmatprep.mubr.f32.mxu0 0.0
          %1688 = vmatmul.mubr.f32.gmra.mrb[0].mxu0 %v1600
          %v1689 = vpop.f32.mrb[0].mxu0
          %v1690 = vadd.f32 %v1561, %v1689
          %v1691 = vpop.f32.mrb[0].mxu0
          %1692 = vmatprep.mubr.f32.mxu0 0.0
          %1693 = vmatmul.mubr.f32.gmra.mrb[0].mxu0 %v1603
          %v1694 = vpop.f32.mrb[0].mxu0
          %v1695 = vadd.f32 %v1566, %v1694
          %v1696 = vpop.f32.mrb[0].mxu0
          %1697 = vmatprep.mubr.f32.mxu0 0.0
          %1698 = vmatmul.mubr.f32.gmra.mrb[0].mxu0 %v1606
          %v1699 = vpop.f32.mrb[0].mxu0
          %v1700 = vadd.f32 %v1571, %v1699
          %v1701 = vpop.f32.mrb[0].mxu0
          %1702 = vmatprep.mubr.f32.mxu0 0.0
          %1703 = vmatmul.mubr.f32.gmra.mrb[0].mxu0 %v1609
          %v1704 = vpop.f32.mrb[0].mxu0
          %v1705 = vadd.f32 %v1576, %v1704
          %v1706 = vpop.f32.mrb[0].mxu0
          %1707 = vmatprep.mubr.f32.mxu0 0.0
          %1708 = vmatmul.mubr.f32.gmra.mrb[0].mxu0 %v1612
          %v1709 = vpop.f32.mrb[0].mxu0
          %v1710 = vadd.f32 %v1581, %v1709
          %v1711 = vpop.f32.mrb[0].mxu0
          %1712 = vmatprep.mubr.f32.mxu0 0.0
          %1713 = vmatmul.mubr.f32.gmra.mrb[0].mxu0 %v1615
          %v1714 = vpop.f32.mrb[0].mxu0
          %v1715 = vadd.f32 %v1586, %v1714
          %v1716 = vpop.f32.mrb[0].mxu0
          %1717 = vmatprep.mubr.f32.mxu0 0.0
          %1718 = vmatmul.mubr.f32.gmra.mrb[0].mxu0 %v1618
          %v1719 = vpop.f32.mrb[0].mxu0
          %v1720 = vadd.f32 %v1591, %v1719
          %v1721 = vpop.f32.mrb[0].mxu0
          %1722 = vmatprep.mubr.f32.mxu0 0.0
          %1723 = vmatmul.mubr.f32.gmra.mrb[0].mxu0 %v1621
          %v1724 = vpop.f32.mrb[0].mxu0
          %v1725 = vadd.f32 %v1596, %v1724
          %v1726 = vpop.f32.mrb[0].mxu0
          %1727 = vdwg.mxu0
          %v1728 = vld [vmem:[#allocation12 + $0x20] sm:$0xff]
          %v1729 = vld [vmem:[#allocation12 + $0x28] sm:$0xff]
          %v1731 = vsel %vm1469, %v1427, 0
          %v1734 = vsel %vm1469, %v1432, 0
          %v1737 = vsel %vm1469, %v1437, 0
          %v1740 = vsel %vm1469, %v1442, 0
          %v1743 = vsel %vm1469, %v1447, 0
          %v1746 = vsel %vm1469, %v1452, 0
          %v1749 = vsel %vm1469, %v1457, 0
          %v1752 = vsel %vm1469, %v1462, 0
          %1754 = vmatprep.subr.mxu0 0.0
          %1755 = vmatpush1.msra.mxu0 %v1728
          %1756 = vmatprep.subr.mxu0 0.0
          %1757 = vmatpush1.msra.mxu0 %v1729
          %1758 = vmatprep.subr.mxu0 0.0
          %1759 = vmatpush1.msra.mxu0 0.0
          %1760 = vmatprep.subr.mxu0 0.0
          %1761 = vmatpush1.msra.mxu0 0.0
          %1762 = vmatprep.subr.mxu0 0.0
          %1763 = vmatpush1.msra.mxu0 0.0
          %1764 = vmatprep.subr.mxu0 0.0
          %1765 = vmatpush1.msra.mxu0 0.0
          %1766 = vmatprep.subr.mxu0 0.0
          %1767 = vmatpush1.msra.mxu0 0.0
          %1768 = vmatprep.subr.mxu0 0.0
          %1769 = vmatpush1.msra.mxu0 0.0
          %1770 = vmatprep.subr.mxu0 0.0
          %1771 = vmatpush1.msra.mxu0 0.0
          %1772 = vmatprep.subr.mxu0 0.0
          %1773 = vmatpush1.msra.mxu0 0.0
          %1774 = vmatprep.subr.mxu0 0.0
          %1775 = vmatpush1.msra.mxu0 0.0
          %1776 = vmatprep.subr.mxu0 0.0
          %1777 = vmatpush1.msra.mxu0 0.0
          %1778 = vmatprep.subr.mxu0 0.0
          %1779 = vmatpush1.msra.mxu0 0.0
          %1780 = vmatprep.subr.mxu0 0.0
          %1781 = vmatpush1.msra.mxu0 0.0
          %1782 = vmatprep.subr.mxu0 0.0
          %1783 = vmatpush1.msra.mxu0 0.0
          %1784 = vmatprep.subr.mxu0 0.0
          %1785 = vmatpush1.msra.mxu0 0.0
          %1786 = vmatprep.subr.mxu0 0.0
          %1787 = vmatpush1.msra.mxu0 0.0
          %1788 = vmatprep.subr.mxu0 0.0
          %1789 = vmatpush1.msra.mxu0 0.0
          %1790 = vmatprep.subr.mxu0 0.0
          %1791 = vmatpush1.msra.mxu0 0.0
          %1792 = vmatprep.subr.mxu0 0.0
          %1793 = vmatpush1.msra.mxu0 0.0
          %1794 = vmatprep.subr.mxu0 0.0
          %1795 = vmatpush1.msra.mxu0 0.0
          %1796 = vmatprep.subr.mxu0 0.0
          %1797 = vmatpush1.msra.mxu0 0.0
          %1798 = vmatprep.subr.mxu0 0.0
          %1799 = vmatpush1.msra.mxu0 0.0
          %1800 = vmatprep.subr.mxu0 0.0
          %1801 = vmatpush1.msra.mxu0 0.0
          %1802 = vmatprep.subr.mxu0 0.0
          %1803 = vmatpush1.msra.mxu0 0.0
          %1804 = vmatprep.subr.mxu0 0.0
          %1805 = vmatpush1.msra.mxu0 0.0
          %1806 = vmatprep.subr.mxu0 0.0
          %1807 = vmatpush1.msra.mxu0 0.0
          %1808 = vmatprep.subr.mxu0 0.0
          %1809 = vmatpush1.msra.mxu0 0.0
          %1810 = vmatprep.subr.mxu0 0.0
          %1811 = vmatpush1.msra.mxu0 0.0
          %1812 = vmatprep.subr.mxu0 0.0
          %1813 = vmatpush1.msra.mxu0 0.0
          %1814 = vmatprep.subr.mxu0 0.0
          %1815 = vmatpush1.msra.mxu0 0.0
          %1816 = vmatprep.subr.mxu0 0.0
          %1817 = vmatpush1.msra.mxu0 0.0
          %1818 = vmatprep.mubr.f32.mxu0 0.0
          %1819 = vmatmul.mubr.f32.gmra.mrb[0].mxu0 %v1731
          %v1820 = vpop.f32.mrb[0].mxu0
          %v1821 = vadd.f32 0.0, %v1820
          %v1822 = vpop.f32.mrb[0].mxu0
          %1823 = vmatprep.mubr.f32.mxu0 0.0
          %1824 = vmatmul.mubr.f32.gmra.mrb[0].mxu0 %v1734
          %v1825 = vpop.f32.mrb[0].mxu0
          %v1826 = vadd.f32 0.0, %v1825
          %v1827 = vpop.f32.mrb[0].mxu0
          %1828 = vmatprep.mubr.f32.mxu0 0.0
          %1829 = vmatmul.mubr.f32.gmra.mrb[0].mxu0 %v1737
          %v1830 = vpop.f32.mrb[0].mxu0
          %v1831 = vadd.f32 0.0, %v1830
          %v1832 = vpop.f32.mrb[0].mxu0
          %1833 = vmatprep.mubr.f32.mxu0 0.0
          %1834 = vmatmul.mubr.f32.gmra.mrb[0].mxu0 %v1740
          %v1835 = vpop.f32.mrb[0].mxu0
          %v1836 = vadd.f32 0.0, %v1835
          %v1837 = vpop.f32.mrb[0].mxu0
          %1838 = vmatprep.mubr.f32.mxu0 0.0
          %1839 = vmatmul.mubr.f32.gmra.mrb[0].mxu0 %v1743
          %v1840 = vpop.f32.mrb[0].mxu0
          %v1841 = vadd.f32 0.0, %v1840
          %v1842 = vpop.f32.mrb[0].mxu0
          %1843 = vmatprep.mubr.f32.mxu0 0.0
          %1844 = vmatmul.mubr.f32.gmra.mrb[0].mxu0 %v1746
          %v1845 = vpop.f32.mrb[0].mxu0
          %v1846 = vadd.f32 0.0, %v1845
          %v1847 = vpop.f32.mrb[0].mxu0
          %1848 = vmatprep.mubr.f32.mxu0 0.0
          %1849 = vmatmul.mubr.f32.gmra.mrb[0].mxu0 %v1749
          %v1850 = vpop.f32.mrb[0].mxu0
          %v1851 = vadd.f32 0.0, %v1850
          %v1852 = vpop.f32.mrb[0].mxu0
          %1853 = vmatprep.mubr.f32.mxu0 0.0
          %1854 = vmatmul.mubr.f32.gmra.mrb[0].mxu0 %v1752
          %v1855 = vpop.f32.mrb[0].mxu0
          %v1856 = vadd.f32 0.0, %v1855
          %v1857 = vpop.f32.mrb[0].mxu0
          %1858 = vdwg.mxu0
          %v1859 = vadd.f32 %v1690, %v1821
          %v1860 = vadd.f32 %v1695, %v1826
          %v1861 = vadd.f32 %v1700, %v1831
          %v1862 = vadd.f32 %v1705, %v1836
          %v1863 = vadd.f32 %v1710, %v1841
          %v1864 = vadd.f32 %v1715, %v1846
          %v1865 = vadd.f32 %v1720, %v1851
          %v1866 = vadd.f32 %v1725, %v1856
          %s1867 = scalar_lea.vmem [#allocation2], %s421
          %v1868 = vld [vmem:[%s1867] sm:$0xff]
          %v1869 = vld [vmem:[%s1867 + $0x8] sm:$0xff]
          %v1870 = vld [vmem:[%s1867 + $0x10] sm:$0xff]
          %v1871 = vld [vmem:[%s1867 + $0x18] sm:$0xff]
          %v1872 = vld [vmem:[%s1867 + $0x20] sm:$0xff]
          %v1873 = vld [vmem:[%s1867 + $0x28] sm:$0xff]
          %v1874 = vld [vmem:[%s1867 + $0x30] sm:$0xff]
          %v1875 = vld [vmem:[%s1867 + $0x38] sm:$0xff]
          %v1876 = vld [vmem:[#allocation12 + $0x30] sm:$0xff]
          %v1877 = vld [vmem:[#allocation12 + $0x38] sm:$0xff]
          %v1879 = vsel %vm1469, %v1868, 0
          %v1882 = vsel %vm1469, %v1869, 0
          %v1885 = vsel %vm1469, %v1870, 0
          %v1888 = vsel %vm1469, %v1871, 0
          %v1891 = vsel %vm1469, %v1872, 0
          %v1894 = vsel %vm1469, %v1873, 0
          %v1897 = vsel %vm1469, %v1874, 0
          %v1900 = vsel %vm1469, %v1875, 0
          %1902 = vmatprep.subr.mxu0 0.0
          %1903 = vmatpush1.msra.mxu0 %v1876
          %1904 = vmatprep.subr.mxu0 0.0
          %1905 = vmatpush1.msra.mxu0 %v1877
          %1906 = vmatprep.subr.mxu0 0.0
          %1907 = vmatpush1.msra.mxu0 0.0
          %1908 = vmatprep.subr.mxu0 0.0
          %1909 = vmatpush1.msra.mxu0 0.0
          %1910 = vmatprep.subr.mxu0 0.0
          %1911 = vmatpush1.msra.mxu0 0.0
          %1912 = vmatprep.subr.mxu0 0.0
          %1913 = vmatpush1.msra.mxu0 0.0
          %1914 = vmatprep.subr.mxu0 0.0
          %1915 = vmatpush1.msra.mxu0 0.0
          %1916 = vmatprep.subr.mxu0 0.0
          %1917 = vmatpush1.msra.mxu0 0.0
          %1918 = vmatprep.subr.mxu0 0.0
          %1919 = vmatpush1.msra.mxu0 0.0
          %1920 = vmatprep.subr.mxu0 0.0
          %1921 = vmatpush1.msra.mxu0 0.0
          %1922 = vmatprep.subr.mxu0 0.0
          %1923 = vmatpush1.msra.mxu0 0.0
          %1924 = vmatprep.subr.mxu0 0.0
          %1925 = vmatpush1.msra.mxu0 0.0
          %1926 = vmatprep.subr.mxu0 0.0
          %1927 = vmatpush1.msra.mxu0 0.0
          %1928 = vmatprep.subr.mxu0 0.0
          %1929 = vmatpush1.msra.mxu0 0.0
          %1930 = vmatprep.subr.mxu0 0.0
          %1931 = vmatpush1.msra.mxu0 0.0
          %1932 = vmatprep.subr.mxu0 0.0
          %1933 = vmatpush1.msra.mxu0 0.0
          %1934 = vmatprep.subr.mxu0 0.0
          %1935 = vmatpush1.msra.mxu0 0.0
          %1936 = vmatprep.subr.mxu0 0.0
          %1937 = vmatpush1.msra.mxu0 0.0
          %1938 = vmatprep.subr.mxu0 0.0
          %1939 = vmatpush1.msra.mxu0 0.0
          %1940 = vmatprep.subr.mxu0 0.0
          %1941 = vmatpush1.msra.mxu0 0.0
          %1942 = vmatprep.subr.mxu0 0.0
          %1943 = vmatpush1.msra.mxu0 0.0
          %1944 = vmatprep.subr.mxu0 0.0
          %1945 = vmatpush1.msra.mxu0 0.0
          %1946 = vmatprep.subr.mxu0 0.0
          %1947 = vmatpush1.msra.mxu0 0.0
          %1948 = vmatprep.subr.mxu0 0.0
          %1949 = vmatpush1.msra.mxu0 0.0
          %1950 = vmatprep.subr.mxu0 0.0
          %1951 = vmatpush1.msra.mxu0 0.0
          %1952 = vmatprep.subr.mxu0 0.0
          %1953 = vmatpush1.msra.mxu0 0.0
          %1954 = vmatprep.subr.mxu0 0.0
          %1955 = vmatpush1.msra.mxu0 0.0
          %1956 = vmatprep.subr.mxu0 0.0
          %1957 = vmatpush1.msra.mxu0 0.0
          %1958 = vmatprep.subr.mxu0 0.0
          %1959 = vmatpush1.msra.mxu0 0.0
          %1960 = vmatprep.subr.mxu0 0.0
          %1961 = vmatpush1.msra.mxu0 0.0
          %1962 = vmatprep.subr.mxu0 0.0
          %1963 = vmatpush1.msra.mxu0 0.0
          %1964 = vmatprep.subr.mxu0 0.0
          %1965 = vmatpush1.msra.mxu0 0.0
          %1966 = vmatprep.mubr.f32.mxu0 0.0
          %1967 = vmatmul.mubr.f32.gmra.mrb[0].mxu0 %v1879
          %v1968 = vpop.f32.mrb[0].mxu0
          %v1969 = vadd.f32 0.0, %v1968
          %v1970 = vpop.f32.mrb[0].mxu0
          %1971 = vmatprep.mubr.f32.mxu0 0.0
          %1972 = vmatmul.mubr.f32.gmra.mrb[0].mxu0 %v1882
          %v1973 = vpop.f32.mrb[0].mxu0
          %v1974 = vadd.f32 0.0, %v1973
          %v1975 = vpop.f32.mrb[0].mxu0
          %1976 = vmatprep.mubr.f32.mxu0 0.0
          %1977 = vmatmul.mubr.f32.gmra.mrb[0].mxu0 %v1885
          %v1978 = vpop.f32.mrb[0].mxu0
          %v1979 = vadd.f32 0.0, %v1978
          %v1980 = vpop.f32.mrb[0].mxu0
          %1981 = vmatprep.mubr.f32.mxu0 0.0
          %1982 = vmatmul.mubr.f32.gmra.mrb[0].mxu0 %v1888
          %v1983 = vpop.f32.mrb[0].mxu0
          %v1984 = vadd.f32 0.0, %v1983
          %v1985 = vpop.f32.mrb[0].mxu0
          %1986 = vmatprep.mubr.f32.mxu0 0.0
          %1987 = vmatmul.mubr.f32.gmra.mrb[0].mxu0 %v1891
          %v1988 = vpop.f32.mrb[0].mxu0
          %v1989 = vadd.f32 0.0, %v1988
          %v1990 = vpop.f32.mrb[0].mxu0
          %1991 = vmatprep.mubr.f32.mxu0 0.0
          %1992 = vmatmul.mubr.f32.gmra.mrb[0].mxu0 %v1894
          %v1993 = vpop.f32.mrb[0].mxu0
          %v1994 = vadd.f32 0.0, %v1993
          %v1995 = vpop.f32.mrb[0].mxu0
          %1996 = vmatprep.mubr.f32.mxu0 0.0
          %1997 = vmatmul.mubr.f32.gmra.mrb[0].mxu0 %v1897
          %v1998 = vpop.f32.mrb[0].mxu0
          %v1999 = vadd.f32 0.0, %v1998
          %v2000 = vpop.f32.mrb[0].mxu0
          %2001 = vmatprep.mubr.f32.mxu0 0.0
          %2002 = vmatmul.mubr.f32.gmra.mrb[0].mxu0 %v1900
          %v2003 = vpop.f32.mrb[0].mxu0
          %v2004 = vadd.f32 0.0, %v2003
          %v2005 = vpop.f32.mrb[0].mxu0
          %2006 = vdwg.mxu0
          %v2007 = vadd.f32 %v1859, %v1969
          %v2008 = vadd.f32 %v1860, %v1974
          %v2009 = vadd.f32 %v1861, %v1979
          %v2010 = vadd.f32 %v1862, %v1984
          %v2011 = vadd.f32 %v1863, %v1989
          %v2012 = vadd.f32 %v1864, %v1994
          %v2013 = vadd.f32 %v1865, %v1999
          %v2014 = vadd.f32 %v1866, %v2004
          %v2015 = vld [vmem:[#allocation13] sm:$0x1]
          %v2017 = vlaneseq
          %v2018 = vshrl.u32 %v2017, 7
          %v2019 = vsub.s32 0, %v2018
          %v2020 = vrot.slane %v2015, %v2019
          %v2022 = vadd.f32 %v2007, %v2020
          %v2023 = vadd.f32 %v2008, %v2020
          %v2024 = vadd.f32 %v2009, %v2020
          %v2025 = vadd.f32 %v2010, %v2020
          %v2026 = vadd.f32 %v2011, %v2020
          %v2027 = vadd.f32 %v2012, %v2020
          %v2028 = vadd.f32 %v2013, %v2020
          %v2029 = vadd.f32 %v2014, %v2020
          %v2030 = vmax.f32 %v2022, 0.0
          %v2031 = vmax.f32 %v2023, 0.0
          %v2032 = vmax.f32 %v2024, 0.0
          %v2033 = vmax.f32 %v2025, 0.0
          %v2034 = vmax.f32 %v2026, 0.0
          %v2035 = vmax.f32 %v2027, 0.0
          %v2036 = vmax.f32 %v2028, 0.0
          %v2037 = vmax.f32 %v2029, 0.0
          %v2038 = vld [vmem:[#allocation3] sm:$0x1]
          %v2039 = vsel %vm1469, %v2030, 0.0
          %v2040 = vsel %vm1469, %v2031, 0.0
          %v2041 = vadd.f32 %v2039, %v2040
          %v2042 = vsel %vm1469, %v2032, 0.0
          %v2043 = vadd.f32 %v2041, %v2042
          %v2044 = vsel %vm1469, %v2033, 0.0
          %v2045 = vadd.f32 %v2043, %v2044
          %v2046 = vsel %vm1469, %v2034, 0.0
          %v2047 = vadd.f32 %v2045, %v2046
          %v2048 = vsel %vm1469, %v2035, 0.0
          %v2049 = vadd.f32 %v2047, %v2048
          %v2050 = vsel %vm1469, %v2036, 0.0
          %v2051 = vadd.f32 %v2049, %v2050
          %v2052 = vsel %vm1469, %v2037, 0.0
          %v2053 = vadd.f32 %v2051, %v2052
          %v2054 = vrot.slane %v2053, 4
          %v2055 = vadd.f32 %v2053, %v2054
          %v2056 = vrot.slane %v2055, 2
          %v2057 = vadd.f32 %v2055, %v2056
          %v2058 = vrot.slane %v2057, 1
          %v2059 = vadd.f32 %v2057, %v2058
          %v2060 = vadd.f32 %v2038, %v2059
          %vm2061 = vcmask 122880
          %2062 = vst.msk [vmem:[#allocation3] sm:$0x1] %vm2061, %v2060
          %p2063 = scmp.eq.s32.totalorder %s32, 1
          // Predicated region
          $region97: #{tpu_custom_call.1} parent=91 // pred_check
            %p2064 = pneg %p2063
          $region98: #{tpu_custom_call.1} parent=91 // pred_check_branch
            %2066 = sbr.rel (%p2064) target = $region100
          $region99: #{tpu_custom_call.1} parent=91 // pred_region
            %v2067 = vld [vmem:[#allocation3] sm:$0x1]
            %v2068 = vmul.f32 %v2067, 0.0078125
            %v2069 = vld [vmem:[#allocation15] sm:$0xff]
            %v2070 = vld [vmem:[#allocation15 + $0x8] sm:$0xff]
            %v2071 = vld [vmem:[#allocation16] sm:$0x1]
            %v2073 = vsel %vm1469, %v2068, 0
            %2075 = vmatprep.subr.mxu0 0.0
            %2076 = vmatpush1.msra.mxu0 %v2069
            %2077 = vmatprep.subr.mxu0 0.0
            %2078 = vmatpush1.msra.mxu0 %v2070
            %2079 = vmatprep.subr.mxu0 0.0
            %2080 = vmatpush1.msra.mxu0 0.0
            %2081 = vmatprep.subr.mxu0 0.0
            %2082 = vmatpush1.msra.mxu0 0.0
            %2083 = vmatprep.subr.mxu0 0.0
            %2084 = vmatpush1.msra.mxu0 0.0
            %2085 = vmatprep.subr.mxu0 0.0
            %2086 = vmatpush1.msra.mxu0 0.0
            %2087 = vmatprep.subr.mxu0 0.0
            %2088 = vmatpush1.msra.mxu0 0.0
            %2089 = vmatprep.subr.mxu0 0.0
            %2090 = vmatpush1.msra.mxu0 0.0
            %2091 = vmatprep.subr.mxu0 0.0
            %2092 = vmatpush1.msra.mxu0 0.0
            %2093 = vmatprep.subr.mxu0 0.0
            %2094 = vmatpush1.msra.mxu0 0.0
            %2095 = vmatprep.subr.mxu0 0.0
            %2096 = vmatpush1.msra.mxu0 0.0
            %2097 = vmatprep.subr.mxu0 0.0
            %2098 = vmatpush1.msra.mxu0 0.0
            %2099 = vmatprep.subr.mxu0 0.0
            %2100 = vmatpush1.msra.mxu0 0.0
            %2101 = vmatprep.subr.mxu0 0.0
            %2102 = vmatpush1.msra.mxu0 0.0
            %2103 = vmatprep.subr.mxu0 0.0
            %2104 = vmatpush1.msra.mxu0 0.0
            %2105 = vmatprep.subr.mxu0 0.0
            %2106 = vmatpush1.msra.mxu0 0.0
            %2107 = vmatprep.subr.mxu0 0.0
            %2108 = vmatpush1.msra.mxu0 0.0
            %2109 = vmatprep.subr.mxu0 0.0
            %2110 = vmatpush1.msra.mxu0 0.0
            %2111 = vmatprep.subr.mxu0 0.0
            %2112 = vmatpush1.msra.mxu0 0.0
            %2113 = vmatprep.subr.mxu0 0.0
            %2114 = vmatpush1.msra.mxu0 0.0
            %2115 = vmatprep.subr.mxu0 0.0
            %2116 = vmatpush1.msra.mxu0 0.0
            %2117 = vmatprep.subr.mxu0 0.0
            %2118 = vmatpush1.msra.mxu0 0.0
            %2119 = vmatprep.subr.mxu0 0.0
            %2120 = vmatpush1.msra.mxu0 0.0
            %2121 = vmatprep.subr.mxu0 0.0
            %2122 = vmatpush1.msra.mxu0 0.0
            %2123 = vmatprep.subr.mxu0 0.0
            %2124 = vmatpush1.msra.mxu0 0.0
            %2125 = vmatprep.subr.mxu0 0.0
            %2126 = vmatpush1.msra.mxu0 0.0
            %2127 = vmatprep.subr.mxu0 0.0
            %2128 = vmatpush1.msra.mxu0 0.0
            %2129 = vmatprep.subr.mxu0 0.0
            %2130 = vmatpush1.msra.mxu0 0.0
            %2131 = vmatprep.subr.mxu0 0.0
            %2132 = vmatpush1.msra.mxu0 0.0
            %2133 = vmatprep.subr.mxu0 0.0
            %2134 = vmatpush1.msra.mxu0 0.0
            %2135 = vmatprep.subr.mxu0 0.0
            %2136 = vmatpush1.msra.mxu0 0.0
            %2137 = vmatprep.subr.mxu0 0.0
            %2138 = vmatpush1.msra.mxu0 0.0
            %2139 = vmatprep.mubr.f32.mxu0 0.0
            %2140 = vmatmul.mubr.f32.gmra.mrb[0].mxu0 %v2073
            %v2141 = vpop.f32.mrb[0].mxu0
            %v2142 = vadd.f32 %v2071, %v2141
            %v2143 = vpop.f32.mrb[0].mxu0
            %2144 = vdwg.mxu0
            %vm2145 = vcmask 24576
            %v2146 = vsel %vm2145, %v2142, -inf
            %2147 = vmax.xlane.f32.xlu0 %v2146
            %v2148 = vpop.xlane.xlu0 %2147
            %v2149 = vsub.f32 %v2142, %v2148
            %v2150 = vmul.f32 %v2149, 1.442695
            %v2151 = vpow.pop %v2150
            %v2152 = vsel %vm2145, %v2151, 0.0
            %2153 = vadd.xlane.f32.xlu0 %v2152
            %v2154 = vpop.xlane.xlu0 %2153
            %v2155 = vrcp.pop %v2154
            %v2156 = vmul.f32 %v2151, %v2155
            %2157 = vst.msk [vmem:[#allocation18] sm:$0x1] %vm2145, %v2156
          $region100: #{tpu_custom_call.1} parent=91 // pred_fallthru
            _
        $region92: #{tpu_custom_call.1} parent=51 // pred_fallthru
          _
        // Predicated region
        $region101: #{tpu_custom_call.1} parent=51 // pred_check
          %p2158 = pneg %p225
        $region102: #{tpu_custom_call.1} parent=51 // pred_check_branch
          %2160 = sbr.rel (%p2158) target = $region104
        $region103: #{tpu_custom_call.1} parent=51 // pred_region
          %s2162 = ssub.s32 16, 16
          %2163 = vsyncadd [#allocation6], %s2162
          %s2165 = sshll.u32 [#allocation18], 4
          %s2166 = int_to_ptr.vmem [resolvable:$true] %s2165
          %2168 = dma.vmem_to_hbm [thread:$0]  %s2166, 16, %s8, [#allocation6]
        $region104: #{tpu_custom_call.1} parent=51 // pred_fallthru
          _
        // Predicated region
        $region105: #{tpu_custom_call.1} parent=51 // pred_check
          %p2169 = pneg %p225
        $region106: #{tpu_custom_call.1} parent=51 // pred_check_branch
          %2171 = sbr.rel (%p2169) target = $region108
        $region107: #{tpu_custom_call.1} parent=51 // pred_region
          %2172 = dma.done [#allocation6], 16
        $region108: #{tpu_custom_call.1} parent=51 // pred_fallthru
          _
      $region52: #{tpu_custom_call.1} parent=5 // pred_fallthru
        _
      %p2173 = scmp.le.s32.totalorder 2, %s22
      // Predicated region
      $region109: #{tpu_custom_call.1} parent=5 // pred_check
        %p2174 = pneg %p2173
      $region110: #{tpu_custom_call.1} parent=5 // pred_check_branch
        %2176 = sbr.rel (%p2174) target = $region112
      $region111: #{tpu_custom_call.1} parent=5 // pred_region
        %s2177 = ssub.s32 %s22, 2
      $region112: #{tpu_custom_call.1} parent=5 // pred_fallthru
        _
    $region6: #{tpu_custom_call.1} parent=1 // loop_footer
      %s26 = sadd.s32 1, %s22
    $region7: #{tpu_custom_call.1} parent=1 // loop_footer_branch
      %21 = sbr.rel target = $region3
    $region8: #{tpu_custom_call.1} parent=1 // loop_exit
      _
    %2178 = vsyncpa [#allocation5], 1
    %s2179 = scalar_lea.sflag [#allocation5], 1
    %2180 = vsyncpa %s2179, 1
    %2181 = vsyncpa [#allocation8], 1
    %s2182 = scalar_lea.sflag [#allocation8], 1
    %2183 = vsyncpa %s2182, 1
    %2184 = vsyncpa [#allocation11], 1
    %2185 = vsyncpa [#allocation14], 1
    %2186 = vsyncpa [#allocation17], 1
    %2187 = vsyncpa [#allocation6], 1
    %s2188 = scalar_lea.sflag [#allocation6], 1
    %2189 = vsyncpa %s2188, 1

</llo_original>
